<compile_context>
chip_gen: v6e
topology: v6e:2x2x1
jax: 0.10.0
libtpu: 0.0.40
codegen_flags: <defaults>
</compile_context>

<pallas_src>
import math

import jax
import jax.numpy as jnp
from jax import lax
from jax.experimental import pallas as pl
from jax.experimental.pallas import tpu as pltpu

# Small test shapes consistent with the module: batch=2, input_dim=4,
# internal_dim=32; L=64 so the upscaled time dim is 128 (one full lane width).
BATCH = 2
INPUT_DIM = 4
INTERNAL_DIM = 32
LENGTH = 64
EPS = 1e-5

_VMEM = pl.BlockSpec(memory_space=pltpu.MemorySpace.VMEM)


def _erf_approx(x):
    # TODO(synk): lax.erf lowering inside Mosaic is not guaranteed on all TPU
    # generations; use the Abramowitz & Stegun 7.1.26 rational approximation
    # (|err| <= 1.5e-7, i.e. float32 noise) built from exp/mul/add/div only.
    p = 0.3275911
    a1, a2, a3, a4, a5 = (0.254829592, -0.284496736, 1.421413741,
                          -1.453152027, 1.061405429)
    ax = jnp.abs(x)
    t = 1.0 / (1.0 + p * ax)
    poly = ((((a5 * t + a4) * t + a3) * t + a2) * t + a1) * t
    y = 1.0 - poly * jnp.exp(-ax * ax)
    return jnp.where(x >= 0.0, y, -y)


def _gelu_exact(x):
    # matches torch.nn.functional.gelu (default, erf-based) to f32 precision
    return 0.5 * x * (1.0 + _erf_approx(x * (1.0 / math.sqrt(2.0))))


def upscaler_kernel(x_ref, w_ref, b_ref, o_ref):
    """x_ref: (N, C_in, L)  w_ref: (3, C_out, C_in)  b_ref: (C_out, 1)
       o_ref: (N, C_out, 2L)"""
    N, C_in, L = x_ref.shape
    C_out = o_ref.shape[1]
    T = o_ref.shape[2]                       # = 2 * L

    # --- build the fused (linear-upsample ∘ conv-tap-shift) matrices in-kernel
    l_idx = lax.broadcasted_iota(jnp.int32, (L, T), 0)
    t_idx = lax.broadcasted_iota(jnp.int32, (L, T), 1)
    u_mats = []
    for k in range(3):                       # conv taps, offset d = k - 1
        s = t_idx + (k - 1)                  # upsampled position feeding output t
        valid = jnp.logical_and(s >= 0, s < T)   # zero padding of the conv
        # torch Upsample(linear, align_corners=False): src = (s + 0.5)/2 - 0.5, clamped >= 0
        src = jnp.maximum(0.5 * s.astype(jnp.float32) - 0.25, 0.0)
        lo_f = jnp.floor(src)
        lam = src - lo_f
        lo = lo_f.astype(jnp.int32)
        hi = jnp.minimum(lo + 1, L - 1)
        u = (jnp.where(l_idx == lo, 1.0 - lam, 0.0) +
             jnp.where(l_idx == hi, lam, 0.0))
        u_mats.append(jnp.where(valid, u, 0.0))       # (L, T)

    bias = b_ref[...]                                  # (C_out, 1)

    # --- per batch element (N tiny -> static unroll); all matmuls hit the MXU
    for n in range(N):
        x_n = x_ref[n]                                 # (C_in, L)
        z = jnp.zeros((C_out, T), jnp.float32)
        for k in range(3):
            # channel mix for tap k, then fused upsample+shift matmul
            a = jnp.dot(w_ref[k], x_n, preferred_element_type=jnp.float32)       # (C_out, L)
            z = z + jnp.dot(a, u_mats[k], preferred_element_type=jnp.float32)    # (C_out, T)
        z = z + bias

        # InstanceNorm1d (affine=False, eps=1e-5): normalize each channel over time
        mu = jnp.mean(z, axis=-1, keepdims=True)
        var = jnp.mean((z - mu) ** 2, axis=-1, keepdims=True)
        zn = (z - mu) * lax.rsqrt(var + EPS)

        o_ref[n] = _gelu_exact(zn)                     # (C_out, T) lane-dense store


def upscaler_forward(x, conv_w, conv_b):
    """x: (N, C_in, L) f32; conv_w: (C_out, C_in, 3); conv_b: (C_out,)."""
    N, C_in, L = x.shape
    C_out = conv_w.shape[0]
    T = 2 * L
    w_k = jnp.transpose(conv_w, (2, 0, 1))             # (3, C_out, C_in): per-tap matrices
    b2 = conv_b.reshape(C_out, 1)
    return pl.pallas_call(
        upscaler_kernel,
        out_shape=jax.ShapeDtypeStruct((N, C_out, T), jnp.float32),
        in_specs=[_VMEM, _VMEM, _VMEM],
        out_specs=_VMEM,
    )(x, w_k, b2)


# ----------------------------------------------------------------------------
# Pure-JAX reference (independent computation path) for verification.
# ----------------------------------------------------------------------------
def upscaler_ref(x, conv_w, conv_b):
    N, C_in, L = x.shape
    T = 2 * L
    t = jnp.arange(T, dtype=jnp.float32)
    src = jnp.maximum(0.5 * t - 0.25, 0.0)             # align_corners=False
    lo_f = jnp.floor(src)
    lam = src - lo_f
    lo = lo_f.astype(jnp.int32)
    hi = jnp.minimum(lo + 1, L - 1)
    y = x[:, :, lo] * (1.0 - lam) + x[:, :, hi] * lam   # (N, C_in, T)
    z = lax.conv_general_dilated(
        y, conv_w, window_strides=(1,), padding=((1, 1),),
        dimension_numbers=("NCH", "OIH", "NCH"))
    z = z + conv_b[None, :, None]
    mu = jnp.mean(z, axis=-1, keepdims=True)
    var = jnp.mean((z - mu) ** 2, axis=-1, keepdims=True)
    zn = (z - mu) / jnp.sqrt(var + EPS)
    return jax.nn.gelu(zn, approximate=False)


# ----------------------------------------------------------------------------
if __name__ == "__main__":
    key = jax.random.PRNGKey(0)
    kx, kw, kb = jax.random.split(key, 3)
    x = jax.random.normal(kx, (BATCH, INPUT_DIM, LENGTH), jnp.float32)
    conv_w = jax.random.normal(kw, (INTERNAL_DIM, INPUT_DIM, 3), jnp.float32) \
        * (1.0 / math.sqrt(INPUT_DIM * 3))
    conv_b = jax.random.normal(kb, (INTERNAL_DIM,), jnp.float32) * 0.1

    fwd = jax.jit(upscaler_forward)
    out = jax.block_until_ready(fwd(x, conv_w, conv_b))

    assert out.shape == (BATCH, INTERNAL_DIM, 2 * LENGTH)
    assert bool(jnp.all(jnp.isfinite(out)))

    ref = upscaler_ref(x, conv_w, conv_b)
    max_err = float(jnp.max(jnp.abs(out - ref)))
    assert bool(jnp.allclose(out, ref, atol=1e-4, rtol=1e-4)), max_err

    print("KERNEL_OK")
</pallas_src>

<mosaic_0001>
module attributes {stable_mosaic.version = 11 : i64} {
  func.func @upscaler_kernel(%arg0: memref<2x4x64xf32, #tpu.memory_space<vmem>>, %arg1: memref<3x32x4xf32, #tpu.memory_space<vmem>>, %arg2: memref<32x1xf32, #tpu.memory_space<vmem>>, %arg3: memref<2x32x128xf32, #tpu.memory_space<vmem>>) attributes {dimension_semantics = [], scalar_prefetch = 0 : i64, scratch_operands = 0 : i64, tpu.core_type = #tpu.core_type<tc>} {
    %0 = tpu.iota {dimensions = array<i32: 0>} : vector<64x128xi32>
    %1 = tpu.iota {dimensions = array<i32: 1>} : vector<64x128xi32>
    %c-1_i32 = arith.constant -1 : i32
    %2 = vector.broadcast %c-1_i32 : i32 to vector<64x128xi32>
    %3 = arith.addi %1, %2 : vector<64x128xi32>
    %c0_i32 = arith.constant 0 : i32
    %4 = vector.broadcast %c0_i32 : i32 to vector<64x128xi32>
    %5 = arith.cmpi sge, %3, %4 : vector<64x128xi32>
    %c128_i32 = arith.constant 128 : i32
    %6 = vector.broadcast %c128_i32 : i32 to vector<64x128xi32>
    %7 = arith.cmpi slt, %3, %6 : vector<64x128xi32>
    %8 = arith.andi %5, %7 : vector<64x128xi1>
    %9 = arith.sitofp %3 : vector<64x128xi32> to vector<64x128xf32>
    %cst = arith.constant 5.000000e-01 : f32
    %10 = vector.broadcast %cst : f32 to vector<64x128xf32>
    %11 = arith.mulf %10, %9 : vector<64x128xf32>
    %cst_0 = arith.constant 2.500000e-01 : f32
    %12 = vector.broadcast %cst_0 : f32 to vector<64x128xf32>
    %13 = arith.subf %11, %12 : vector<64x128xf32>
    %cst_1 = arith.constant 0.000000e+00 : f32
    %14 = vector.broadcast %cst_1 : f32 to vector<64x128xf32>
    %15 = arith.maximumf %13, %14 : vector<64x128xf32>
    %16 = math.floor %15 : vector<64x128xf32>
    %17 = arith.subf %15, %16 : vector<64x128xf32>
    %18 = arith.fptosi %16 : vector<64x128xf32> to vector<64x128xi32>
    %c1_i32 = arith.constant 1 : i32
    %19 = vector.broadcast %c1_i32 : i32 to vector<64x128xi32>
    %20 = arith.addi %18, %19 : vector<64x128xi32>
    %c63_i32 = arith.constant 63 : i32
    %21 = vector.broadcast %c63_i32 : i32 to vector<64x128xi32>
    %22 = arith.minsi %20, %21 : vector<64x128xi32>
    %23 = arith.cmpi eq, %0, %18 : vector<64x128xi32>
    %cst_2 = arith.constant 1.000000e+00 : f32
    %24 = vector.broadcast %cst_2 : f32 to vector<64x128xf32>
    %25 = arith.subf %24, %17 : vector<64x128xf32>
    %cst_3 = arith.constant 0.000000e+00 : f32
    %26 = vector.broadcast %cst_3 : f32 to vector<64x128xf32>
    %27 = arith.select %23, %25, %26 : vector<64x128xi1>, vector<64x128xf32>
    %28 = arith.cmpi eq, %0, %22 : vector<64x128xi32>
    %cst_4 = arith.constant 0.000000e+00 : f32
    %29 = vector.broadcast %cst_4 : f32 to vector<64x128xf32>
    %30 = arith.select %28, %17, %29 : vector<64x128xi1>, vector<64x128xf32>
    %31 = arith.addf %27, %30 : vector<64x128xf32>
    %cst_5 = arith.constant 0.000000e+00 : f32
    %32 = vector.broadcast %cst_5 : f32 to vector<64x128xf32>
    %33 = arith.select %8, %31, %32 : vector<64x128xi1>, vector<64x128xf32>
    %c0_i32_6 = arith.constant 0 : i32
    %34 = vector.broadcast %c0_i32_6 : i32 to vector<64x128xi32>
    %35 = arith.addi %1, %34 : vector<64x128xi32>
    %c0_i32_7 = arith.constant 0 : i32
    %36 = vector.broadcast %c0_i32_7 : i32 to vector<64x128xi32>
    %37 = arith.cmpi sge, %35, %36 : vector<64x128xi32>
    %c128_i32_8 = arith.constant 128 : i32
    %38 = vector.broadcast %c128_i32_8 : i32 to vector<64x128xi32>
    %39 = arith.cmpi slt, %35, %38 : vector<64x128xi32>
    %40 = arith.andi %37, %39 : vector<64x128xi1>
    %41 = arith.sitofp %35 : vector<64x128xi32> to vector<64x128xf32>
    %cst_9 = arith.constant 5.000000e-01 : f32
    %42 = vector.broadcast %cst_9 : f32 to vector<64x128xf32>
    %43 = arith.mulf %42, %41 : vector<64x128xf32>
    %cst_10 = arith.constant 2.500000e-01 : f32
    %44 = vector.broadcast %cst_10 : f32 to vector<64x128xf32>
    %45 = arith.subf %43, %44 : vector<64x128xf32>
    %cst_11 = arith.constant 0.000000e+00 : f32
    %46 = vector.broadcast %cst_11 : f32 to vector<64x128xf32>
    %47 = arith.maximumf %45, %46 : vector<64x128xf32>
    %48 = math.floor %47 : vector<64x128xf32>
    %49 = arith.subf %47, %48 : vector<64x128xf32>
    %50 = arith.fptosi %48 : vector<64x128xf32> to vector<64x128xi32>
    %c1_i32_12 = arith.constant 1 : i32
    %51 = vector.broadcast %c1_i32_12 : i32 to vector<64x128xi32>
    %52 = arith.addi %50, %51 : vector<64x128xi32>
    %c63_i32_13 = arith.constant 63 : i32
    %53 = vector.broadcast %c63_i32_13 : i32 to vector<64x128xi32>
    %54 = arith.minsi %52, %53 : vector<64x128xi32>
    %55 = arith.cmpi eq, %0, %50 : vector<64x128xi32>
    %cst_14 = arith.constant 1.000000e+00 : f32
    %56 = vector.broadcast %cst_14 : f32 to vector<64x128xf32>
    %57 = arith.subf %56, %49 : vector<64x128xf32>
    %cst_15 = arith.constant 0.000000e+00 : f32
    %58 = vector.broadcast %cst_15 : f32 to vector<64x128xf32>
    %59 = arith.select %55, %57, %58 : vector<64x128xi1>, vector<64x128xf32>
    %60 = arith.cmpi eq, %0, %54 : vector<64x128xi32>
    %cst_16 = arith.constant 0.000000e+00 : f32
    %61 = vector.broadcast %cst_16 : f32 to vector<64x128xf32>
    %62 = arith.select %60, %49, %61 : vector<64x128xi1>, vector<64x128xf32>
    %63 = arith.addf %59, %62 : vector<64x128xf32>
    %cst_17 = arith.constant 0.000000e+00 : f32
    %64 = vector.broadcast %cst_17 : f32 to vector<64x128xf32>
    %65 = arith.select %40, %63, %64 : vector<64x128xi1>, vector<64x128xf32>
    %c1_i32_18 = arith.constant 1 : i32
    %66 = vector.broadcast %c1_i32_18 : i32 to vector<64x128xi32>
    %67 = arith.addi %1, %66 : vector<64x128xi32>
    %c0_i32_19 = arith.constant 0 : i32
    %68 = vector.broadcast %c0_i32_19 : i32 to vector<64x128xi32>
    %69 = arith.cmpi sge, %67, %68 : vector<64x128xi32>
    %c128_i32_20 = arith.constant 128 : i32
    %70 = vector.broadcast %c128_i32_20 : i32 to vector<64x128xi32>
    %71 = arith.cmpi slt, %67, %70 : vector<64x128xi32>
    %72 = arith.andi %69, %71 : vector<64x128xi1>
    %73 = arith.sitofp %67 : vector<64x128xi32> to vector<64x128xf32>
    %cst_21 = arith.constant 5.000000e-01 : f32
    %74 = vector.broadcast %cst_21 : f32 to vector<64x128xf32>
    %75 = arith.mulf %74, %73 : vector<64x128xf32>
    %cst_22 = arith.constant 2.500000e-01 : f32
    %76 = vector.broadcast %cst_22 : f32 to vector<64x128xf32>
    %77 = arith.subf %75, %76 : vector<64x128xf32>
    %cst_23 = arith.constant 0.000000e+00 : f32
    %78 = vector.broadcast %cst_23 : f32 to vector<64x128xf32>
    %79 = arith.maximumf %77, %78 : vector<64x128xf32>
    %80 = math.floor %79 : vector<64x128xf32>
    %81 = arith.subf %79, %80 : vector<64x128xf32>
    %82 = arith.fptosi %80 : vector<64x128xf32> to vector<64x128xi32>
    %c1_i32_24 = arith.constant 1 : i32
    %83 = vector.broadcast %c1_i32_24 : i32 to vector<64x128xi32>
    %84 = arith.addi %82, %83 : vector<64x128xi32>
    %c63_i32_25 = arith.constant 63 : i32
    %85 = vector.broadcast %c63_i32_25 : i32 to vector<64x128xi32>
    %86 = arith.minsi %84, %85 : vector<64x128xi32>
    %87 = arith.cmpi eq, %0, %82 : vector<64x128xi32>
    %cst_26 = arith.constant 1.000000e+00 : f32
    %88 = vector.broadcast %cst_26 : f32 to vector<64x128xf32>
    %89 = arith.subf %88, %81 : vector<64x128xf32>
    %cst_27 = arith.constant 0.000000e+00 : f32
    %90 = vector.broadcast %cst_27 : f32 to vector<64x128xf32>
    %91 = arith.select %87, %89, %90 : vector<64x128xi1>, vector<64x128xf32>
    %92 = arith.cmpi eq, %0, %86 : vector<64x128xi32>
    %cst_28 = arith.constant 0.000000e+00 : f32
    %93 = vector.broadcast %cst_28 : f32 to vector<64x128xf32>
    %94 = arith.select %92, %81, %93 : vector<64x128xi1>, vector<64x128xf32>
    %95 = arith.addf %91, %94 : vector<64x128xf32>
    %cst_29 = arith.constant 0.000000e+00 : f32
    %96 = vector.broadcast %cst_29 : f32 to vector<64x128xf32>
    %97 = arith.select %72, %95, %96 : vector<64x128xi1>, vector<64x128xf32>
    %c0 = arith.constant 0 : index
    %c0_30 = arith.constant 0 : index
    %98 = vector.load %arg2[%c0, %c0_30] : memref<32x1xf32, #tpu.memory_space<vmem>>, vector<32x1xf32>
    %c0_31 = arith.constant 0 : index
    %c0_32 = arith.constant 0 : index
    %c0_33 = arith.constant 0 : index
    %99 = vector.load %arg0[%c0_31, %c0_32, %c0_33] : memref<2x4x64xf32, #tpu.memory_space<vmem>>, vector<1x4x64xf32>
    %100 = vector.shape_cast %99 : vector<1x4x64xf32> to vector<4x64xf32>
    %cst_34 = arith.constant 0.000000e+00 : f32
    %101 = vector.broadcast %cst_34 : f32 to vector<32x128xf32>
    %c0_35 = arith.constant 0 : index
    %c0_36 = arith.constant 0 : index
    %c0_37 = arith.constant 0 : index
    %102 = vector.load %arg1[%c0_35, %c0_36, %c0_37] : memref<3x32x4xf32, #tpu.memory_space<vmem>>, vector<1x32x4xf32>
    %103 = vector.shape_cast %102 : vector<1x32x4xf32> to vector<32x4xf32>
    %cst_38 = arith.constant dense<0.000000e+00> : vector<32x64xf32>
    %104 = tpu.matmul %103, %100, %cst_38 {dimension_numbers = #tpu.dot_dimension_numbers<[1], [0], [0], [1], [0, 0, 1, 1], [], []>} : vector<32x4xf32>, vector<4x64xf32>, vector<32x64xf32> -> vector<32x64xf32>
    %cst_39 = arith.constant dense<0.000000e+00> : vector<32x128xf32>
    %105 = tpu.matmul %104, %33, %cst_39 {dimension_numbers = #tpu.dot_dimension_numbers<[1], [0], [0], [1], [0, 0, 1, 1], [], []>} : vector<32x64xf32>, vector<64x128xf32>, vector<32x128xf32> -> vector<32x128xf32>
    %106 = arith.addf %101, %105 : vector<32x128xf32>
    %c1 = arith.constant 1 : index
    %c0_40 = arith.constant 0 : index
    %c0_41 = arith.constant 0 : index
    %107 = vector.load %arg1[%c1, %c0_40, %c0_41] : memref<3x32x4xf32, #tpu.memory_space<vmem>>, vector<1x32x4xf32>
    %108 = vector.shape_cast %107 : vector<1x32x4xf32> to vector<32x4xf32>
    %cst_42 = arith.constant dense<0.000000e+00> : vector<32x64xf32>
    %109 = tpu.matmul %108, %100, %cst_42 {dimension_numbers = #tpu.dot_dimension_numbers<[1], [0], [0], [1], [0, 0, 1, 1], [], []>} : vector<32x4xf32>, vector<4x64xf32>, vector<32x64xf32> -> vector<32x64xf32>
    %cst_43 = arith.constant dense<0.000000e+00> : vector<32x128xf32>
    %110 = tpu.matmul %109, %65, %cst_43 {dimension_numbers = #tpu.dot_dimension_numbers<[1], [0], [0], [1], [0, 0, 1, 1], [], []>} : vector<32x64xf32>, vector<64x128xf32>, vector<32x128xf32> -> vector<32x128xf32>
    %111 = arith.addf %106, %110 : vector<32x128xf32>
    %c2 = arith.constant 2 : index
    %c0_44 = arith.constant 0 : index
    %c0_45 = arith.constant 0 : index
    %112 = vector.load %arg1[%c2, %c0_44, %c0_45] : memref<3x32x4xf32, #tpu.memory_space<vmem>>, vector<1x32x4xf32>
    %113 = vector.shape_cast %112 : vector<1x32x4xf32> to vector<32x4xf32>
    %cst_46 = arith.constant dense<0.000000e+00> : vector<32x64xf32>
    %114 = tpu.matmul %113, %100, %cst_46 {dimension_numbers = #tpu.dot_dimension_numbers<[1], [0], [0], [1], [0, 0, 1, 1], [], []>} : vector<32x4xf32>, vector<4x64xf32>, vector<32x64xf32> -> vector<32x64xf32>
    %cst_47 = arith.constant dense<0.000000e+00> : vector<32x128xf32>
    %115 = tpu.matmul %114, %97, %cst_47 {dimension_numbers = #tpu.dot_dimension_numbers<[1], [0], [0], [1], [0, 0, 1, 1], [], []>} : vector<32x64xf32>, vector<64x128xf32>, vector<32x128xf32> -> vector<32x128xf32>
    %116 = arith.addf %111, %115 : vector<32x128xf32>
    %117 = vector.broadcast %98 : vector<32x1xf32> to vector<32x128xf32>
    %118 = arith.addf %116, %117 : vector<32x128xf32>
    %cst_48 = arith.constant dense<0.000000e+00> : vector<32xf32>
    %119 = vector.multi_reduction <add>, %118, %cst_48 [1] : vector<32x128xf32> to vector<32xf32>
    %120 = vector.shape_cast %119 : vector<32xf32> to vector<32x1xf32>
    %cst_49 = arith.constant 1.280000e+02 : f32
    %121 = vector.broadcast %cst_49 : f32 to vector<32x1xf32>
    %122 = arith.divf %120, %121 : vector<32x1xf32>
    %123 = vector.broadcast %122 : vector<32x1xf32> to vector<32x128xf32>
    %124 = arith.subf %118, %123 : vector<32x128xf32>
    %125 = arith.mulf %124, %124 : vector<32x128xf32>
    %cst_50 = arith.constant dense<0.000000e+00> : vector<32xf32>
    %126 = vector.multi_reduction <add>, %125, %cst_50 [1] : vector<32x128xf32> to vector<32xf32>
    %127 = vector.shape_cast %126 : vector<32xf32> to vector<32x1xf32>
    %cst_51 = arith.constant 1.280000e+02 : f32
    %128 = vector.broadcast %cst_51 : f32 to vector<32x1xf32>
    %129 = arith.divf %127, %128 : vector<32x1xf32>
    %130 = vector.broadcast %122 : vector<32x1xf32> to vector<32x128xf32>
    %131 = arith.subf %118, %130 : vector<32x128xf32>
    %cst_52 = arith.constant 9.99999974E-6 : f32
    %132 = vector.broadcast %cst_52 : f32 to vector<32x1xf32>
    %133 = arith.addf %129, %132 : vector<32x1xf32>
    %134 = math.rsqrt %133 : vector<32x1xf32>
    %135 = vector.broadcast %134 : vector<32x1xf32> to vector<32x128xf32>
    %136 = arith.mulf %131, %135 : vector<32x128xf32>
    %cst_53 = arith.constant 5.000000e-01 : f32
    %137 = vector.broadcast %cst_53 : f32 to vector<32x128xf32>
    %138 = arith.mulf %137, %136 : vector<32x128xf32>
    %cst_54 = arith.constant 0.707106769 : f32
    %139 = vector.broadcast %cst_54 : f32 to vector<32x128xf32>
    %140 = arith.mulf %136, %139 : vector<32x128xf32>
    %141 = math.absf %140 : vector<32x128xf32>
    %cst_55 = arith.constant 0.327591091 : f32
    %142 = vector.broadcast %cst_55 : f32 to vector<32x128xf32>
    %143 = arith.mulf %142, %141 : vector<32x128xf32>
    %cst_56 = arith.constant 1.000000e+00 : f32
    %144 = vector.broadcast %cst_56 : f32 to vector<32x128xf32>
    %145 = arith.addf %144, %143 : vector<32x128xf32>
    %cst_57 = arith.constant 1.000000e+00 : f32
    %146 = vector.broadcast %cst_57 : f32 to vector<32x128xf32>
    %147 = arith.divf %146, %145 : vector<32x128xf32>
    %cst_58 = arith.constant 1.06140542 : f32
    %148 = vector.broadcast %cst_58 : f32 to vector<32x128xf32>
    %149 = arith.mulf %148, %147 : vector<32x128xf32>
    %cst_59 = arith.constant -1.45315206 : f32
    %150 = vector.broadcast %cst_59 : f32 to vector<32x128xf32>
    %151 = arith.addf %149, %150 : vector<32x128xf32>
    %152 = arith.mulf %151, %147 : vector<32x128xf32>
    %cst_60 = arith.constant 1.42141378 : f32
    %153 = vector.broadcast %cst_60 : f32 to vector<32x128xf32>
    %154 = arith.addf %152, %153 : vector<32x128xf32>
    %155 = arith.mulf %154, %147 : vector<32x128xf32>
    %cst_61 = arith.constant -0.284496725 : f32
    %156 = vector.broadcast %cst_61 : f32 to vector<32x128xf32>
    %157 = arith.addf %155, %156 : vector<32x128xf32>
    %158 = arith.mulf %157, %147 : vector<32x128xf32>
    %cst_62 = arith.constant 0.254829586 : f32
    %159 = vector.broadcast %cst_62 : f32 to vector<32x128xf32>
    %160 = arith.addf %158, %159 : vector<32x128xf32>
    %161 = arith.mulf %160, %147 : vector<32x128xf32>
    %cst_63 = arith.constant 0.000000e+00 : f32
    %162 = vector.broadcast %cst_63 : f32 to vector<32x128xf32>
    %163 = arith.subf %162, %141 : vector<32x128xf32>
    %164 = arith.mulf %163, %141 : vector<32x128xf32>
    %165 = math.exp %164 : vector<32x128xf32>
    %166 = arith.mulf %161, %165 : vector<32x128xf32>
    %cst_64 = arith.constant 1.000000e+00 : f32
    %167 = vector.broadcast %cst_64 : f32 to vector<32x128xf32>
    %168 = arith.subf %167, %166 : vector<32x128xf32>
    %cst_65 = arith.constant 0.000000e+00 : f32
    %169 = vector.broadcast %cst_65 : f32 to vector<32x128xf32>
    %170 = arith.cmpf oge, %140, %169 : vector<32x128xf32>
    %cst_66 = arith.constant 0.000000e+00 : f32
    %171 = vector.broadcast %cst_66 : f32 to vector<32x128xf32>
    %172 = arith.subf %171, %168 : vector<32x128xf32>
    %173 = arith.select %170, %168, %172 : vector<32x128xi1>, vector<32x128xf32>
    %cst_67 = arith.constant 1.000000e+00 : f32
    %174 = vector.broadcast %cst_67 : f32 to vector<32x128xf32>
    %175 = arith.addf %174, %173 : vector<32x128xf32>
    %176 = arith.mulf %138, %175 : vector<32x128xf32>
    %c0_68 = arith.constant 0 : index
    %c0_69 = arith.constant 0 : index
    %c0_70 = arith.constant 0 : index
    %177 = vector.load %arg3[%c0_68, %c0_69, %c0_70] : memref<2x32x128xf32, #tpu.memory_space<vmem>>, vector<1x32x128xf32>
    %178 = vector.shape_cast %177 : vector<1x32x128xf32> to vector<32x128xf32>
    %179 = vector.shape_cast %176 : vector<32x128xf32> to vector<1x32x128xf32>
    tpu.vector_store %arg3[%c0_68, %c0_69, %c0_70], %179 {strides = array<i32>} : memref<2x32x128xf32, #tpu.memory_space<vmem>>, vector<1x32x128xf32>,
    %c1_71 = arith.constant 1 : index
    %c0_72 = arith.constant 0 : index
    %c0_73 = arith.constant 0 : index
    %180 = vector.load %arg0[%c1_71, %c0_72, %c0_73] : memref<2x4x64xf32, #tpu.memory_space<vmem>>, vector<1x4x64xf32>
    %181 = vector.shape_cast %180 : vector<1x4x64xf32> to vector<4x64xf32>
    %cst_74 = arith.constant 0.000000e+00 : f32
    %182 = vector.broadcast %cst_74 : f32 to vector<32x128xf32>
    %c0_75 = arith.constant 0 : index
    %c0_76 = arith.constant 0 : index
    %c0_77 = arith.constant 0 : index
    %183 = vector.load %arg1[%c0_75, %c0_76, %c0_77] : memref<3x32x4xf32, #tpu.memory_space<vmem>>, vector<1x32x4xf32>
    %184 = vector.shape_cast %183 : vector<1x32x4xf32> to vector<32x4xf32>
    %cst_78 = arith.constant dense<0.000000e+00> : vector<32x64xf32>
    %185 = tpu.matmul %184, %181, %cst_78 {dimension_numbers = #tpu.dot_dimension_numbers<[1], [0], [0], [1], [0, 0, 1, 1], [], []>} : vector<32x4xf32>, vector<4x64xf32>, vector<32x64xf32> -> vector<32x64xf32>
    %cst_79 = arith.constant dense<0.000000e+00> : vector<32x128xf32>
    %186 = tpu.matmul %185, %33, %cst_79 {dimension_numbers = #tpu.dot_dimension_numbers<[1], [0], [0], [1], [0, 0, 1, 1], [], []>} : vector<32x64xf32>, vector<64x128xf32>, vector<32x128xf32> -> vector<32x128xf32>
    %187 = arith.addf %182, %186 : vector<32x128xf32>
    %c1_80 = arith.constant 1 : index
    %c0_81 = arith.constant 0 : index
    %c0_82 = arith.constant 0 : index
    %188 = vector.load %arg1[%c1_80, %c0_81, %c0_82] : memref<3x32x4xf32, #tpu.memory_space<vmem>>, vector<1x32x4xf32>
    %189 = vector.shape_cast %188 : vector<1x32x4xf32> to vector<32x4xf32>
    %cst_83 = arith.constant dense<0.000000e+00> : vector<32x64xf32>
    %190 = tpu.matmul %189, %181, %cst_83 {dimension_numbers = #tpu.dot_dimension_numbers<[1], [0], [0], [1], [0, 0, 1, 1], [], []>} : vector<32x4xf32>, vector<4x64xf32>, vector<32x64xf32> -> vector<32x64xf32>
    %cst_84 = arith.constant dense<0.000000e+00> : vector<32x128xf32>
    %191 = tpu.matmul %190, %65, %cst_84 {dimension_numbers = #tpu.dot_dimension_numbers<[1], [0], [0], [1], [0, 0, 1, 1], [], []>} : vector<32x64xf32>, vector<64x128xf32>, vector<32x128xf32> -> vector<32x128xf32>
    %192 = arith.addf %187, %191 : vector<32x128xf32>
    %c2_85 = arith.constant 2 : index
    %c0_86 = arith.constant 0 : index
    %c0_87 = arith.constant 0 : index
    %193 = vector.load %arg1[%c2_85, %c0_86, %c0_87] : memref<3x32x4xf32, #tpu.memory_space<vmem>>, vector<1x32x4xf32>
    %194 = vector.shape_cast %193 : vector<1x32x4xf32> to vector<32x4xf32>
    %cst_88 = arith.constant dense<0.000000e+00> : vector<32x64xf32>
    %195 = tpu.matmul %194, %181, %cst_88 {dimension_numbers = #tpu.dot_dimension_numbers<[1], [0], [0], [1], [0, 0, 1, 1], [], []>} : vector<32x4xf32>, vector<4x64xf32>, vector<32x64xf32> -> vector<32x64xf32>
    %cst_89 = arith.constant dense<0.000000e+00> : vector<32x128xf32>
    %196 = tpu.matmul %195, %97, %cst_89 {dimension_numbers = #tpu.dot_dimension_numbers<[1], [0], [0], [1], [0, 0, 1, 1], [], []>} : vector<32x64xf32>, vector<64x128xf32>, vector<32x128xf32> -> vector<32x128xf32>
    %197 = arith.addf %192, %196 : vector<32x128xf32>
    %198 = vector.broadcast %98 : vector<32x1xf32> to vector<32x128xf32>
    %199 = arith.addf %197, %198 : vector<32x128xf32>
    %cst_90 = arith.constant dense<0.000000e+00> : vector<32xf32>
    %200 = vector.multi_reduction <add>, %199, %cst_90 [1] : vector<32x128xf32> to vector<32xf32>
    %201 = vector.shape_cast %200 : vector<32xf32> to vector<32x1xf32>
    %cst_91 = arith.constant 1.280000e+02 : f32
    %202 = vector.broadcast %cst_91 : f32 to vector<32x1xf32>
    %203 = arith.divf %201, %202 : vector<32x1xf32>
    %204 = vector.broadcast %203 : vector<32x1xf32> to vector<32x128xf32>
    %205 = arith.subf %199, %204 : vector<32x128xf32>
    %206 = arith.mulf %205, %205 : vector<32x128xf32>
    %cst_92 = arith.constant dense<0.000000e+00> : vector<32xf32>
    %207 = vector.multi_reduction <add>, %206, %cst_92 [1] : vector<32x128xf32> to vector<32xf32>
    %208 = vector.shape_cast %207 : vector<32xf32> to vector<32x1xf32>
    %cst_93 = arith.constant 1.280000e+02 : f32
    %209 = vector.broadcast %cst_93 : f32 to vector<32x1xf32>
    %210 = arith.divf %208, %209 : vector<32x1xf32>
    %211 = vector.broadcast %203 : vector<32x1xf32> to vector<32x128xf32>
    %212 = arith.subf %199, %211 : vector<32x128xf32>
    %cst_94 = arith.constant 9.99999974E-6 : f32
    %213 = vector.broadcast %cst_94 : f32 to vector<32x1xf32>
    %214 = arith.addf %210, %213 : vector<32x1xf32>
    %215 = math.rsqrt %214 : vector<32x1xf32>
    %216 = vector.broadcast %215 : vector<32x1xf32> to vector<32x128xf32>
    %217 = arith.mulf %212, %216 : vector<32x128xf32>
    %cst_95 = arith.constant 5.000000e-01 : f32
    %218 = vector.broadcast %cst_95 : f32 to vector<32x128xf32>
    %219 = arith.mulf %218, %217 : vector<32x128xf32>
    %cst_96 = arith.constant 0.707106769 : f32
    %220 = vector.broadcast %cst_96 : f32 to vector<32x128xf32>
    %221 = arith.mulf %217, %220 : vector<32x128xf32>
    %222 = math.absf %221 : vector<32x128xf32>
    %cst_97 = arith.constant 0.327591091 : f32
    %223 = vector.broadcast %cst_97 : f32 to vector<32x128xf32>
    %224 = arith.mulf %223, %222 : vector<32x128xf32>
    %cst_98 = arith.constant 1.000000e+00 : f32
    %225 = vector.broadcast %cst_98 : f32 to vector<32x128xf32>
    %226 = arith.addf %225, %224 : vector<32x128xf32>
    %cst_99 = arith.constant 1.000000e+00 : f32
    %227 = vector.broadcast %cst_99 : f32 to vector<32x128xf32>
    %228 = arith.divf %227, %226 : vector<32x128xf32>
    %cst_100 = arith.constant 1.06140542 : f32
    %229 = vector.broadcast %cst_100 : f32 to vector<32x128xf32>
    %230 = arith.mulf %229, %228 : vector<32x128xf32>
    %cst_101 = arith.constant -1.45315206 : f32
    %231 = vector.broadcast %cst_101 : f32 to vector<32x128xf32>
    %232 = arith.addf %230, %231 : vector<32x128xf32>
    %233 = arith.mulf %232, %228 : vector<32x128xf32>
    %cst_102 = arith.constant 1.42141378 : f32
    %234 = vector.broadcast %cst_102 : f32 to vector<32x128xf32>
    %235 = arith.addf %233, %234 : vector<32x128xf32>
    %236 = arith.mulf %235, %228 : vector<32x128xf32>
    %cst_103 = arith.constant -0.284496725 : f32
    %237 = vector.broadcast %cst_103 : f32 to vector<32x128xf32>
    %238 = arith.addf %236, %237 : vector<32x128xf32>
    %239 = arith.mulf %238, %228 : vector<32x128xf32>
    %cst_104 = arith.constant 0.254829586 : f32
    %240 = vector.broadcast %cst_104 : f32 to vector<32x128xf32>
    %241 = arith.addf %239, %240 : vector<32x128xf32>
    %242 = arith.mulf %241, %228 : vector<32x128xf32>
    %cst_105 = arith.constant 0.000000e+00 : f32
    %243 = vector.broadcast %cst_105 : f32 to vector<32x128xf32>
    %244 = arith.subf %243, %222 : vector<32x128xf32>
    %245 = arith.mulf %244, %222 : vector<32x128xf32>
    %246 = math.exp %245 : vector<32x128xf32>
    %247 = arith.mulf %242, %246 : vector<32x128xf32>
    %cst_106 = arith.constant 1.000000e+00 : f32
    %248 = vector.broadcast %cst_106 : f32 to vector<32x128xf32>
    %249 = arith.subf %248, %247 : vector<32x128xf32>
    %cst_107 = arith.constant 0.000000e+00 : f32
    %250 = vector.broadcast %cst_107 : f32 to vector<32x128xf32>
    %251 = arith.cmpf oge, %221, %250 : vector<32x128xf32>
    %cst_108 = arith.constant 0.000000e+00 : f32
    %252 = vector.broadcast %cst_108 : f32 to vector<32x128xf32>
    %253 = arith.subf %252, %249 : vector<32x128xf32>
    %254 = arith.select %251, %249, %253 : vector<32x128xi1>, vector<32x128xf32>
    %cst_109 = arith.constant 1.000000e+00 : f32
    %255 = vector.broadcast %cst_109 : f32 to vector<32x128xf32>
    %256 = arith.addf %255, %254 : vector<32x128xf32>
    %257 = arith.mulf %219, %256 : vector<32x128xf32>
    %c1_110 = arith.constant 1 : index
    %c0_111 = arith.constant 0 : index
    %c0_112 = arith.constant 0 : index
    %258 = vector.load %arg3[%c1_110, %c0_111, %c0_112] : memref<2x32x128xf32, #tpu.memory_space<vmem>>, vector<1x32x128xf32>
    %259 = vector.shape_cast %258 : vector<1x32x128xf32> to vector<32x128xf32>
    %260 = vector.shape_cast %257 : vector<32x128xf32> to vector<1x32x128xf32>
    tpu.vector_store %arg3[%c1_110, %c0_111, %c0_112], %260 {strides = array<i32>} : memref<2x32x128xf32, #tpu.memory_space<vmem>>, vector<1x32x128xf32>,
    return
  }
}

</mosaic_0001>

<llo_original>
// kernel: upscaler_forward.1
$region0: #{upscaler_forward.1}
  #allocation0 [shape = 'u32[]', space=smem, size = 0x4, offset = 0x4, fixed_abs, tag = 'smem constant byte address 0x4 - core index']
  #allocation1 [shape = 'u32[144,128]{1,0:T(1,128)}', space=vmem, size = 0x12000, scoped, tag = 'internal scratch']
  %s0 = inlined_call_operand.vmem [shape: f32[2,4,64], index: 0, kind: input, shape index: {}]
  %s1 = inlined_call_operand.vmem [shape: f32[3,32,4], index: 1, kind: input, shape index: {}]
  %s2 = inlined_call_operand.vmem [shape: f32[32,1], index: 2, kind: input, shape index: {}]
  %s3 = inlined_call_operand.hbm [shape: f32[2,32,128], index: 3, kind: output, shape index: {}]
  %s4 = sld [smem:[#allocation0]]
  $region22: #{upscaler_forward.1} parent=0
    _
  %s6 = ssub.s32 1, %s4
  %s7 = scalar_select 0, %s6, %s4
  $region1: #{upscaler_forward.1} parent=0
    #allocation2 [shape = 'u8[32768]{0}', space=vmem, size = 0x8000, scoped, tag = 'output window, operand 0, single buffered']
    #allocation3 [shape = 's32[1]{0}', space=sflag, size = 0x4, scoped, tag = 'scoped memory for upscaler_forward.1']
    %8 = vsyncpa [#allocation3], 0
    // Predicated region
    $region2: #{upscaler_forward.1} parent=1 // pred_check
      _
    $region3: #{upscaler_forward.1} parent=1 // pred_check_branch
      %10 = sbr.rel (0) target = $region5
    $region4: #{upscaler_forward.1} parent=1 // pred_region
      _
    $region5: #{upscaler_forward.1} parent=1 // pred_fallthru
      _
    // Predicated region
    $region6: #{upscaler_forward.1} parent=1 // pred_check
      _
    $region7: #{upscaler_forward.1} parent=1 // pred_check_branch
      %12 = sbr.rel (0) target = $region9
    $region8: #{upscaler_forward.1} parent=1 // pred_region
      _
    $region9: #{upscaler_forward.1} parent=1 // pred_fallthru
      _
    // Predicated region
    $region10: #{upscaler_forward.1} parent=1 // pred_check
      _
    $region11: #{upscaler_forward.1} parent=1 // pred_check_branch
      %14 = sbr.rel (0) target = $region13
    $region12: #{upscaler_forward.1} parent=1 // pred_region
      _
    $region13: #{upscaler_forward.1} parent=1 // pred_fallthru
      _
    %v15 = vlaneseq
    %v16 = vshrl.u32 %v15, 7
    %v17 = vadd.s32 %v16, 8
    %v18 = vadd.s32 %v16, 16
    %v19 = vadd.s32 %v16, 24
    %v20 = vadd.s32 %v16, 32
    %v21 = vadd.s32 %v16, 40
    %v22 = vadd.s32 %v16, 48
    %v23 = vadd.s32 %v16, 56
    %v24 = vlaneseq
    %v25 = vand.u32 %v24, 127
    %v26 = vadd.s32 %v25, 4294967295
    %vm27 = vcmp.ge.s32.totalorder %v26, 0
    %vm28 = vcmp.lt.s32.totalorder %v26, 128
    %vm29 = vmand %vm27, %vm28
    %v30 = vcvt.s32.f32 %v26
    %v31 = vmul.f32 %v30, 0.5
    %v32 = vsub.f32 %v31, 0.25
    %v33 = vmax.f32 %v32, 0.0
    %v34 = vfloor.f32 %v33
    %v35 = vsub.f32 %v33, %v34
    %v36 = vcvt.f32.s32.to.zero.pseudo %v34
    %v37 = vadd.s32 %v36, 1
    %vm38 = vcmp.lt.s32.totalorder %v37, 63
    %v39 = vsel %vm38, %v37, 63
    %vm40 = vcmp.eq.s32.totalorder %v16, %v36
    %vm41 = vcmp.eq.s32.totalorder %v17, %v36
    %vm42 = vcmp.eq.s32.totalorder %v18, %v36
    %vm43 = vcmp.eq.s32.totalorder %v19, %v36
    %vm44 = vcmp.eq.s32.totalorder %v20, %v36
    %vm45 = vcmp.eq.s32.totalorder %v21, %v36
    %vm46 = vcmp.eq.s32.totalorder %v22, %v36
    %vm47 = vcmp.eq.s32.totalorder %v23, %v36
    %v48 = vsub.f32 1.0, %v35
    %v49 = vsel %vm40, %v48, 0.0
    %v50 = vsel %vm41, %v48, 0.0
    %v51 = vsel %vm42, %v48, 0.0
    %v52 = vsel %vm43, %v48, 0.0
    %v53 = vsel %vm44, %v48, 0.0
    %v54 = vsel %vm45, %v48, 0.0
    %v55 = vsel %vm46, %v48, 0.0
    %v56 = vsel %vm47, %v48, 0.0
    %vm57 = vcmp.eq.s32.totalorder %v16, %v39
    %vm58 = vcmp.eq.s32.totalorder %v17, %v39
    %vm59 = vcmp.eq.s32.totalorder %v18, %v39
    %vm60 = vcmp.eq.s32.totalorder %v19, %v39
    %vm61 = vcmp.eq.s32.totalorder %v20, %v39
    %vm62 = vcmp.eq.s32.totalorder %v21, %v39
    %vm63 = vcmp.eq.s32.totalorder %v22, %v39
    %vm64 = vcmp.eq.s32.totalorder %v23, %v39
    %v65 = vsel %vm57, %v35, 0.0
    %v66 = vsel %vm58, %v35, 0.0
    %v67 = vsel %vm59, %v35, 0.0
    %v68 = vsel %vm60, %v35, 0.0
    %v69 = vsel %vm61, %v35, 0.0
    %v70 = vsel %vm62, %v35, 0.0
    %v71 = vsel %vm63, %v35, 0.0
    %v72 = vsel %vm64, %v35, 0.0
    %v73 = vadd.f32 %v49, %v65
    %v74 = vadd.f32 %v50, %v66
    %v75 = vadd.f32 %v51, %v67
    %v76 = vadd.f32 %v52, %v68
    %v77 = vadd.f32 %v53, %v69
    %v78 = vadd.f32 %v54, %v70
    %v79 = vadd.f32 %v55, %v71
    %v80 = vadd.f32 %v56, %v72
    %v81 = vsel %vm29, %v73, 0.0
    %v82 = vsel %vm29, %v74, 0.0
    %v83 = vsel %vm29, %v75, 0.0
    %v84 = vsel %vm29, %v76, 0.0
    %v85 = vsel %vm29, %v77, 0.0
    %v86 = vsel %vm29, %v78, 0.0
    %v87 = vsel %vm29, %v79, 0.0
    %v88 = vsel %vm29, %v80, 0.0
    %vm89 = vcmp.ge.s32.totalorder %v25, 0
    %vm90 = vcmp.lt.s32.totalorder %v25, 128
    %vm91 = vmand %vm89, %vm90
    %v92 = vcvt.s32.f32 %v25
    %v93 = vmul.f32 %v92, 0.5
    %v94 = vsub.f32 %v93, 0.25
    %v95 = vmax.f32 %v94, 0.0
    %v96 = vfloor.f32 %v95
    %v97 = vsub.f32 %v95, %v96
    %v98 = vcvt.f32.s32.to.zero.pseudo %v96
    %v99 = vadd.s32 %v98, 1
    %vm100 = vcmp.lt.s32.totalorder %v99, 63
    %v101 = vsel %vm100, %v99, 63
    %vm102 = vcmp.eq.s32.totalorder %v16, %v98
    %vm103 = vcmp.eq.s32.totalorder %v17, %v98
    %vm104 = vcmp.eq.s32.totalorder %v18, %v98
    %vm105 = vcmp.eq.s32.totalorder %v19, %v98
    %vm106 = vcmp.eq.s32.totalorder %v20, %v98
    %vm107 = vcmp.eq.s32.totalorder %v21, %v98
    %vm108 = vcmp.eq.s32.totalorder %v22, %v98
    %vm109 = vcmp.eq.s32.totalorder %v23, %v98
    %v110 = vsub.f32 1.0, %v97
    %v111 = vsel %vm102, %v110, 0.0
    %v112 = vsel %vm103, %v110, 0.0
    %v113 = vsel %vm104, %v110, 0.0
    %v114 = vsel %vm105, %v110, 0.0
    %v115 = vsel %vm106, %v110, 0.0
    %v116 = vsel %vm107, %v110, 0.0
    %v117 = vsel %vm108, %v110, 0.0
    %v118 = vsel %vm109, %v110, 0.0
    %vm119 = vcmp.eq.s32.totalorder %v16, %v101
    %vm120 = vcmp.eq.s32.totalorder %v17, %v101
    %vm121 = vcmp.eq.s32.totalorder %v18, %v101
    %vm122 = vcmp.eq.s32.totalorder %v19, %v101
    %vm123 = vcmp.eq.s32.totalorder %v20, %v101
    %vm124 = vcmp.eq.s32.totalorder %v21, %v101
    %vm125 = vcmp.eq.s32.totalorder %v22, %v101
    %vm126 = vcmp.eq.s32.totalorder %v23, %v101
    %v127 = vsel %vm119, %v97, 0.0
    %v128 = vsel %vm120, %v97, 0.0
    %v129 = vsel %vm121, %v97, 0.0
    %v130 = vsel %vm122, %v97, 0.0
    %v131 = vsel %vm123, %v97, 0.0
    %v132 = vsel %vm124, %v97, 0.0
    %v133 = vsel %vm125, %v97, 0.0
    %v134 = vsel %vm126, %v97, 0.0
    %v135 = vadd.f32 %v111, %v127
    %v136 = vadd.f32 %v112, %v128
    %v137 = vadd.f32 %v113, %v129
    %v138 = vadd.f32 %v114, %v130
    %v139 = vadd.f32 %v115, %v131
    %v140 = vadd.f32 %v116, %v132
    %v141 = vadd.f32 %v117, %v133
    %v142 = vadd.f32 %v118, %v134
    %v143 = vsel %vm91, %v135, 0.0
    %v144 = vsel %vm91, %v136, 0.0
    %v145 = vsel %vm91, %v137, 0.0
    %v146 = vsel %vm91, %v138, 0.0
    %v147 = vsel %vm91, %v139, 0.0
    %v148 = vsel %vm91, %v140, 0.0
    %v149 = vsel %vm91, %v141, 0.0
    %v150 = vsel %vm91, %v142, 0.0
    %v151 = vadd.s32 %v25, 1
    %vm152 = vcmp.ge.s32.totalorder %v151, 0
    %vm153 = vcmp.lt.s32.totalorder %v151, 128
    %vm154 = vmand %vm152, %vm153
    %v155 = vcvt.s32.f32 %v151
    %v156 = vmul.f32 %v155, 0.5
    %v157 = vsub.f32 %v156, 0.25
    %v158 = vmax.f32 %v157, 0.0
    %v159 = vfloor.f32 %v158
    %v160 = vsub.f32 %v158, %v159
    %v161 = vcvt.f32.s32.to.zero.pseudo %v159
    %v162 = vadd.s32 %v161, 1
    %vm163 = vcmp.lt.s32.totalorder %v162, 63
    %v164 = vsel %vm163, %v162, 63
    %vm165 = vcmp.eq.s32.totalorder %v16, %v161
    %vm166 = vcmp.eq.s32.totalorder %v17, %v161
    %vm167 = vcmp.eq.s32.totalorder %v18, %v161
    %vm168 = vcmp.eq.s32.totalorder %v19, %v161
    %vm169 = vcmp.eq.s32.totalorder %v20, %v161
    %vm170 = vcmp.eq.s32.totalorder %v21, %v161
    %vm171 = vcmp.eq.s32.totalorder %v22, %v161
    %vm172 = vcmp.eq.s32.totalorder %v23, %v161
    %v173 = vsub.f32 1.0, %v160
    %v174 = vsel %vm165, %v173, 0.0
    %v175 = vsel %vm166, %v173, 0.0
    %v176 = vsel %vm167, %v173, 0.0
    %v177 = vsel %vm168, %v173, 0.0
    %v178 = vsel %vm169, %v173, 0.0
    %v179 = vsel %vm170, %v173, 0.0
    %v180 = vsel %vm171, %v173, 0.0
    %v181 = vsel %vm172, %v173, 0.0
    %vm182 = vcmp.eq.s32.totalorder %v16, %v164
    %vm183 = vcmp.eq.s32.totalorder %v17, %v164
    %vm184 = vcmp.eq.s32.totalorder %v18, %v164
    %vm185 = vcmp.eq.s32.totalorder %v19, %v164
    %vm186 = vcmp.eq.s32.totalorder %v20, %v164
    %vm187 = vcmp.eq.s32.totalorder %v21, %v164
    %vm188 = vcmp.eq.s32.totalorder %v22, %v164
    %vm189 = vcmp.eq.s32.totalorder %v23, %v164
    %v190 = vsel %vm182, %v160, 0.0
    %v191 = vsel %vm183, %v160, 0.0
    %v192 = vsel %vm184, %v160, 0.0
    %v193 = vsel %vm185, %v160, 0.0
    %v194 = vsel %vm186, %v160, 0.0
    %v195 = vsel %vm187, %v160, 0.0
    %v196 = vsel %vm188, %v160, 0.0
    %v197 = vsel %vm189, %v160, 0.0
    %v198 = vadd.f32 %v174, %v190
    %v199 = vadd.f32 %v175, %v191
    %v200 = vadd.f32 %v176, %v192
    %v201 = vadd.f32 %v177, %v193
    %v202 = vadd.f32 %v178, %v194
    %v203 = vadd.f32 %v179, %v195
    %v204 = vadd.f32 %v180, %v196
    %v205 = vadd.f32 %v181, %v197
    %v206 = vsel %vm154, %v198, 0.0
    %v207 = vsel %vm154, %v199, 0.0
    %v208 = vsel %vm154, %v200, 0.0
    %v209 = vsel %vm154, %v201, 0.0
    %v210 = vsel %vm154, %v202, 0.0
    %v211 = vsel %vm154, %v203, 0.0
    %v212 = vsel %vm154, %v204, 0.0
    %v213 = vsel %vm154, %v205, 0.0
    %v214 = vld [vmem:[%s2] sm:$0xff]
    %v215 = vld [vmem:[%s2 + $0x8] sm:$0xff]
    %v216 = vld [vmem:[%s2 + $0x10] sm:$0xff]
    %v217 = vld [vmem:[%s2 + $0x18] sm:$0xff]
    %v218 = vld [vmem:[%s0] sm:$0xf]
    %v219 = vld [vmem:[%s1] sm:$0xff]
    %v220 = vld [vmem:[%s1 + $0x8] sm:$0xff]
    %v221 = vld [vmem:[%s1 + $0x10] sm:$0xff]
    %v222 = vld [vmem:[%s1 + $0x18] sm:$0xff]
    %vm223 = vcmask 31744
    %v225 = vsel %vm223, %v219, 0
    %v228 = vsel %vm223, %v220, 0
    %v231 = vsel %vm223, %v221, 0
    %v234 = vsel %vm223, %v222, 0
    %vm236 = vcmask 1043456
    %v238 = vsel %vm236, %v218, 0
    %240 = vmatprep.subr.mxu0 0.0
    %241 = vmatpush1.msra.mxu0 0.0
    %242 = vmatprep.subr.mxu0 0.0
    %243 = vmatpush1.msra.mxu0 0.0
    %244 = vmatprep.subr.mxu0 0.0
    %245 = vmatpush1.msra.mxu0 0.0
    %246 = vmatprep.subr.mxu0 0.0
    %247 = vmatpush1.msra.mxu0 0.0
    %248 = vmatprep.subr.mxu0 0.0
    %249 = vmatpush1.msra.mxu0 0.0
    %250 = vmatprep.subr.mxu0 0.0
    %251 = vmatpush1.msra.mxu0 0.0
    %252 = vmatprep.subr.mxu0 0.0
    %253 = vmatpush1.msra.mxu0 0.0
    %254 = vmatprep.subr.mxu0 0.0
    %255 = vmatpush1.msra.mxu0 0.0
    %256 = vmatprep.subr.mxu0 0.0
    %257 = vmatpush1.msra.mxu0 0.0
    %258 = vmatprep.subr.mxu0 0.0
    %259 = vmatpush1.msra.mxu0 0.0
    %260 = vmatprep.subr.mxu0 0.0
    %261 = vmatpush1.msra.mxu0 0.0
    %262 = vmatprep.subr.mxu0 0.0
    %263 = vmatpush1.msra.mxu0 0.0
    %264 = vmatprep.subr.mxu0 0.0
    %265 = vmatpush1.msra.mxu0 0.0
    %266 = vmatprep.subr.mxu0 0.0
    %267 = vmatpush1.msra.mxu0 0.0
    %268 = vmatprep.subr.mxu0 0.0
    %269 = vmatpush1.msra.mxu0 0.0
    %270 = vmatprep.subr.mxu0 0.0
    %271 = vmatpush1.msra.mxu0 %v238
    %272 = vmatprep.subr.mxu0 0.0
    %273 = vmatpush2.msra.mxu0 0.0
    %274 = vmatprep.subr.mxu0 0.0
    %275 = vmatpush2.msra.mxu0 0.0
    %276 = vmatprep.subr.mxu0 0.0
    %277 = vmatpush2.msra.mxu0 0.0
    %278 = vmatprep.subr.mxu0 0.0
    %279 = vmatpush2.msra.mxu0 0.0
    %280 = vmatprep.subr.mxu0 0.0
    %281 = vmatpush2.msra.mxu0 0.0
    %282 = vmatprep.subr.mxu0 0.0
    %283 = vmatpush2.msra.mxu0 0.0
    %284 = vmatprep.subr.mxu0 0.0
    %285 = vmatpush2.msra.mxu0 0.0
    %286 = vmatprep.subr.mxu0 0.0
    %287 = vmatpush2.msra.mxu0 0.0
    %288 = vmatprep.subr.mxu0 0.0
    %289 = vmatpush2.msra.mxu0 0.0
    %290 = vmatprep.subr.mxu0 0.0
    %291 = vmatpush2.msra.mxu0 0.0
    %292 = vmatprep.subr.mxu0 0.0
    %293 = vmatpush2.msra.mxu0 0.0
    %294 = vmatprep.subr.mxu0 0.0
    %295 = vmatpush2.msra.mxu0 0.0
    %296 = vmatprep.subr.mxu0 0.0
    %297 = vmatpush2.msra.mxu0 0.0
    %298 = vmatprep.subr.mxu0 0.0
    %299 = vmatpush2.msra.mxu0 0.0
    %300 = vmatprep.subr.mxu0 0.0
    %301 = vmatpush2.msra.mxu0 0.0
    %302 = vmatprep.subr.mxu0 0.0
    %303 = vmatpush2.msra.mxu0 0.0
    %304 = vmatprep.mubr.f32.mxu0 0.0
    %305 = vmatmul.mubr.f32.gmra.mxu0 %v225
    %v306 = vpop.f32.mrf.mxu0
    %v307 = vadd.f32 0.0, %v306
    %v308 = vpop.f32.mrf.mxu0
    %309 = vmatprep.mubr.f32.mxu0 0.0
    %310 = vmatmul.mubr.f32.gmra.mxu0 %v228
    %v311 = vpop.f32.mrf.mxu0
    %v312 = vadd.f32 0.0, %v311
    %v313 = vpop.f32.mrf.mxu0
    %314 = vmatprep.mubr.f32.mxu0 0.0
    %315 = vmatmul.mubr.f32.gmra.mxu0 %v231
    %v316 = vpop.f32.mrf.mxu0
    %v317 = vadd.f32 0.0, %v316
    %v318 = vpop.f32.mrf.mxu0
    %319 = vmatprep.mubr.f32.mxu0 0.0
    %320 = vmatmul.mubr.f32.gmra.mxu0 %v234
    %v321 = vpop.f32.mrf.mxu0
    %v322 = vadd.f32 0.0, %v321
    %v323 = vpop.f32.mrf.mxu0
    %324 = vdwg.mxu0
    %s325 = scalar_lea.vmem %s1, 32
    %v326 = vld [vmem:[%s325] sm:$0xff]
    %v327 = vld [vmem:[%s325 + $0x8] sm:$0xff]
    %v328 = vld [vmem:[%s325 + $0x10] sm:$0xff]
    %v329 = vld [vmem:[%s325 + $0x18] sm:$0xff]
    %v331 = vsel %vm223, %v326, 0
    %v334 = vsel %vm223, %v327, 0
    %v337 = vsel %vm223, %v328, 0
    %v340 = vsel %vm223, %v329, 0
    %342 = vmatprep.subr.mxu0 0.0
    %343 = vmatpush1.msra.mxu0 0.0
    %344 = vmatprep.subr.mxu0 0.0
    %345 = vmatpush1.msra.mxu0 0.0
    %346 = vmatprep.subr.mxu0 0.0
    %347 = vmatpush1.msra.mxu0 0.0
    %348 = vmatprep.subr.mxu0 0.0
    %349 = vmatpush1.msra.mxu0 0.0
    %350 = vmatprep.subr.mxu0 0.0
    %351 = vmatpush1.msra.mxu0 0.0
    %352 = vmatprep.subr.mxu0 0.0
    %353 = vmatpush1.msra.mxu0 0.0
    %354 = vmatprep.subr.mxu0 0.0
    %355 = vmatpush1.msra.mxu0 0.0
    %356 = vmatprep.subr.mxu0 0.0
    %357 = vmatpush1.msra.mxu0 0.0
    %358 = vmatprep.subr.mxu0 0.0
    %359 = vmatpush1.msra.mxu0 0.0
    %360 = vmatprep.subr.mxu0 0.0
    %361 = vmatpush1.msra.mxu0 0.0
    %362 = vmatprep.subr.mxu0 0.0
    %363 = vmatpush1.msra.mxu0 0.0
    %364 = vmatprep.subr.mxu0 0.0
    %365 = vmatpush1.msra.mxu0 0.0
    %366 = vmatprep.subr.mxu0 0.0
    %367 = vmatpush1.msra.mxu0 0.0
    %368 = vmatprep.subr.mxu0 0.0
    %369 = vmatpush1.msra.mxu0 0.0
    %370 = vmatprep.subr.mxu0 0.0
    %371 = vmatpush1.msra.mxu0 0.0
    %372 = vmatprep.subr.mxu0 0.0
    %373 = vmatpush1.msra.mxu0 %v238
    %374 = vmatprep.subr.mxu0 0.0
    %375 = vmatpush2.msra.mxu0 0.0
    %376 = vmatprep.subr.mxu0 0.0
    %377 = vmatpush2.msra.mxu0 0.0
    %378 = vmatprep.subr.mxu0 0.0
    %379 = vmatpush2.msra.mxu0 0.0
    %380 = vmatprep.subr.mxu0 0.0
    %381 = vmatpush2.msra.mxu0 0.0
    %382 = vmatprep.subr.mxu0 0.0
    %383 = vmatpush2.msra.mxu0 0.0
    %384 = vmatprep.subr.mxu0 0.0
    %385 = vmatpush2.msra.mxu0 0.0
    %386 = vmatprep.subr.mxu0 0.0
    %387 = vmatpush2.msra.mxu0 0.0
    %388 = vmatprep.subr.mxu0 0.0
    %389 = vmatpush2.msra.mxu0 0.0
    %390 = vmatprep.subr.mxu0 0.0
    %391 = vmatpush2.msra.mxu0 0.0
    %392 = vmatprep.subr.mxu0 0.0
    %393 = vmatpush2.msra.mxu0 0.0
    %394 = vmatprep.subr.mxu0 0.0
    %395 = vmatpush2.msra.mxu0 0.0
    %396 = vmatprep.subr.mxu0 0.0
    %397 = vmatpush2.msra.mxu0 0.0
    %398 = vmatprep.subr.mxu0 0.0
    %399 = vmatpush2.msra.mxu0 0.0
    %400 = vmatprep.subr.mxu0 0.0
    %401 = vmatpush2.msra.mxu0 0.0
    %402 = vmatprep.subr.mxu0 0.0
    %403 = vmatpush2.msra.mxu0 0.0
    %404 = vmatprep.subr.mxu0 0.0
    %405 = vmatpush2.msra.mxu0 0.0
    %406 = vmatprep.mubr.f32.mxu0 0.0
    %407 = vmatmul.mubr.f32.gmra.mxu0 %v331
    %v408 = vpop.f32.mrf.mxu0
    %v409 = vadd.f32 0.0, %v408
    %v410 = vpop.f32.mrf.mxu0
    %411 = vmatprep.mubr.f32.mxu0 0.0
    %412 = vmatmul.mubr.f32.gmra.mxu0 %v334
    %v413 = vpop.f32.mrf.mxu0
    %v414 = vadd.f32 0.0, %v413
    %v415 = vpop.f32.mrf.mxu0
    %416 = vmatprep.mubr.f32.mxu0 0.0
    %417 = vmatmul.mubr.f32.gmra.mxu0 %v337
    %v418 = vpop.f32.mrf.mxu0
    %v419 = vadd.f32 0.0, %v418
    %v420 = vpop.f32.mrf.mxu0
    %421 = vmatprep.mubr.f32.mxu0 0.0
    %422 = vmatmul.mubr.f32.gmra.mxu0 %v340
    %v423 = vpop.f32.mrf.mxu0
    %v424 = vadd.f32 0.0, %v423
    %v425 = vpop.f32.mrf.mxu0
    %426 = vdwg.mxu0
    %vm427 = vcmask 523264
    %v429 = vsel %vm427, %v409, 0
    %v432 = vsel %vm427, %v414, 0
    %v435 = vsel %vm427, %v419, 0
    %v438 = vsel %vm427, %v424, 0
    %440 = vmatprep.subr.mxu0 0.0
    %441 = vmatpush1.msra.mxu0 0.0
    %442 = vmatprep.subr.mxu0 0.0
    %443 = vmatpush1.msra.mxu0 0.0
    %444 = vmatprep.subr.mxu0 0.0
    %445 = vmatpush1.msra.mxu0 0.0
    %446 = vmatprep.subr.mxu0 0.0
    %447 = vmatpush1.msra.mxu0 0.0
    %448 = vmatprep.subr.mxu0 0.0
    %449 = vmatpush1.msra.mxu0 0.0
    %450 = vmatprep.subr.mxu0 0.0
    %451 = vmatpush1.msra.mxu0 0.0
    %452 = vmatprep.subr.mxu0 0.0
    %453 = vmatpush1.msra.mxu0 0.0
    %454 = vmatprep.subr.mxu0 0.0
    %455 = vmatpush1.msra.mxu0 0.0
    %456 = vmatprep.subr.mxu0 0.0
    %457 = vmatpush1.msra.mxu0 %v150
    %458 = vmatprep.subr.mxu0 0.0
    %459 = vmatpush1.msra.mxu0 %v149
    %460 = vmatprep.subr.mxu0 0.0
    %461 = vmatpush1.msra.mxu0 %v148
    %462 = vmatprep.subr.mxu0 0.0
    %463 = vmatpush1.msra.mxu0 %v147
    %464 = vmatprep.subr.mxu0 0.0
    %465 = vmatpush1.msra.mxu0 %v146
    %466 = vmatprep.subr.mxu0 0.0
    %467 = vmatpush1.msra.mxu0 %v145
    %468 = vmatprep.subr.mxu0 0.0
    %469 = vmatpush1.msra.mxu0 %v144
    %470 = vmatprep.subr.mxu0 0.0
    %471 = vmatpush1.msra.mxu0 %v143
    %472 = vmatprep.subr.mxu0 0.0
    %473 = vmatpush2.msra.mxu0 0.0
    %474 = vmatprep.subr.mxu0 0.0
    %475 = vmatpush2.msra.mxu0 0.0
    %476 = vmatprep.subr.mxu0 0.0
    %477 = vmatpush2.msra.mxu0 0.0
    %478 = vmatprep.subr.mxu0 0.0
    %479 = vmatpush2.msra.mxu0 0.0
    %480 = vmatprep.subr.mxu0 0.0
    %481 = vmatpush2.msra.mxu0 0.0
    %482 = vmatprep.subr.mxu0 0.0
    %483 = vmatpush2.msra.mxu0 0.0
    %484 = vmatprep.subr.mxu0 0.0
    %485 = vmatpush2.msra.mxu0 0.0
    %486 = vmatprep.subr.mxu0 0.0
    %487 = vmatpush2.msra.mxu0 0.0
    %488 = vmatprep.subr.mxu0 0.0
    %489 = vmatpush2.msra.mxu0 0.0
    %490 = vmatprep.subr.mxu0 0.0
    %491 = vmatpush2.msra.mxu0 0.0
    %492 = vmatprep.subr.mxu0 0.0
    %493 = vmatpush2.msra.mxu0 0.0
    %494 = vmatprep.subr.mxu0 0.0
    %495 = vmatpush2.msra.mxu0 0.0
    %496 = vmatprep.subr.mxu0 0.0
    %497 = vmatpush2.msra.mxu0 0.0
    %498 = vmatprep.subr.mxu0 0.0
    %499 = vmatpush2.msra.mxu0 0.0
    %500 = vmatprep.subr.mxu0 0.0
    %501 = vmatpush2.msra.mxu0 0.0
    %502 = vmatprep.subr.mxu0 0.0
    %503 = vmatpush2.msra.mxu0 0.0
    %504 = vmatprep.mubr.f32.mxu0 0.0
    %505 = vmatmul.mubr.f32.gmra.mxu0 %v429
    %v506 = vpop.f32.mrf.mxu0
    %v507 = vadd.f32 0.0, %v506
    %v508 = vpop.f32.mrf.mxu0
    %509 = vmatprep.mubr.f32.mxu0 0.0
    %510 = vmatmul.mubr.f32.gmra.mxu0 %v432
    %v511 = vpop.f32.mrf.mxu0
    %v512 = vadd.f32 0.0, %v511
    %v513 = vpop.f32.mrf.mxu0
    %514 = vmatprep.mubr.f32.mxu0 0.0
    %515 = vmatmul.mubr.f32.gmra.mxu0 %v435
    %v516 = vpop.f32.mrf.mxu0
    %v517 = vadd.f32 0.0, %v516
    %v518 = vpop.f32.mrf.mxu0
    %519 = vmatprep.mubr.f32.mxu0 0.0
    %520 = vmatmul.mubr.f32.gmra.mxu0 %v438
    %v521 = vpop.f32.mrf.mxu0
    %v522 = vadd.f32 0.0, %v521
    %v523 = vpop.f32.mrf.mxu0
    %524 = vdwg.mxu0
    %v526 = vsel %vm427, %v307, 0
    %v529 = vsel %vm427, %v312, 0
    %v532 = vsel %vm427, %v317, 0
    %v535 = vsel %vm427, %v322, 0
    %537 = vmatprep.subr.mxu0 0.0
    %538 = vmatpush1.msra.mxu0 0.0
    %539 = vmatprep.subr.mxu0 0.0
    %540 = vmatpush1.msra.mxu0 0.0
    %541 = vmatprep.subr.mxu0 0.0
    %542 = vmatpush1.msra.mxu0 0.0
    %543 = vmatprep.subr.mxu0 0.0
    %544 = vmatpush1.msra.mxu0 0.0
    %545 = vmatprep.subr.mxu0 0.0
    %546 = vmatpush1.msra.mxu0 0.0
    %547 = vmatprep.subr.mxu0 0.0
    %548 = vmatpush1.msra.mxu0 0.0
    %549 = vmatprep.subr.mxu0 0.0
    %550 = vmatpush1.msra.mxu0 0.0
    %551 = vmatprep.subr.mxu0 0.0
    %552 = vmatpush1.msra.mxu0 0.0
    %553 = vmatprep.subr.mxu0 0.0
    %554 = vmatpush1.msra.mxu0 %v88
    %555 = vmatprep.subr.mxu0 0.0
    %556 = vmatpush1.msra.mxu0 %v87
    %557 = vmatprep.subr.mxu0 0.0
    %558 = vmatpush1.msra.mxu0 %v86
    %559 = vmatprep.subr.mxu0 0.0
    %560 = vmatpush1.msra.mxu0 %v85
    %561 = vmatprep.subr.mxu0 0.0
    %562 = vmatpush1.msra.mxu0 %v84
    %563 = vmatprep.subr.mxu0 0.0
    %564 = vmatpush1.msra.mxu0 %v83
    %565 = vmatprep.subr.mxu0 0.0
    %566 = vmatpush1.msra.mxu0 %v82
    %567 = vmatprep.subr.mxu0 0.0
    %568 = vmatpush1.msra.mxu0 %v81
    %569 = vmatprep.subr.mxu0 0.0
    %570 = vmatpush2.msra.mxu0 0.0
    %571 = vmatprep.subr.mxu0 0.0
    %572 = vmatpush2.msra.mxu0 0.0
    %573 = vmatprep.subr.mxu0 0.0
    %574 = vmatpush2.msra.mxu0 0.0
    %575 = vmatprep.subr.mxu0 0.0
    %576 = vmatpush2.msra.mxu0 0.0
    %577 = vmatprep.subr.mxu0 0.0
    %578 = vmatpush2.msra.mxu0 0.0
    %579 = vmatprep.subr.mxu0 0.0
    %580 = vmatpush2.msra.mxu0 0.0
    %581 = vmatprep.subr.mxu0 0.0
    %582 = vmatpush2.msra.mxu0 0.0
    %583 = vmatprep.subr.mxu0 0.0
    %584 = vmatpush2.msra.mxu0 0.0
    %585 = vmatprep.subr.mxu0 0.0
    %586 = vmatpush2.msra.mxu0 0.0
    %587 = vmatprep.subr.mxu0 0.0
    %588 = vmatpush2.msra.mxu0 0.0
    %589 = vmatprep.subr.mxu0 0.0
    %590 = vmatpush2.msra.mxu0 0.0
    %591 = vmatprep.subr.mxu0 0.0
    %592 = vmatpush2.msra.mxu0 0.0
    %593 = vmatprep.subr.mxu0 0.0
    %594 = vmatpush2.msra.mxu0 0.0
    %595 = vmatprep.subr.mxu0 0.0
    %596 = vmatpush2.msra.mxu0 0.0
    %597 = vmatprep.subr.mxu0 0.0
    %598 = vmatpush2.msra.mxu0 0.0
    %599 = vmatprep.subr.mxu0 0.0
    %600 = vmatpush2.msra.mxu0 0.0
    %601 = vmatprep.mubr.f32.mxu0 0.0
    %602 = vmatmul.mubr.f32.gmra.mxu0 %v526
    %v603 = vpop.f32.mrf.mxu0
    %v604 = vadd.f32 %v507, %v603
    %v605 = vpop.f32.mrf.mxu0
    %606 = vmatprep.mubr.f32.mxu0 0.0
    %607 = vmatmul.mubr.f32.gmra.mxu0 %v529
    %v608 = vpop.f32.mrf.mxu0
    %v609 = vadd.f32 %v512, %v608
    %v610 = vpop.f32.mrf.mxu0
    %611 = vmatprep.mubr.f32.mxu0 0.0
    %612 = vmatmul.mubr.f32.gmra.mxu0 %v532
    %v613 = vpop.f32.mrf.mxu0
    %v614 = vadd.f32 %v517, %v613
    %v615 = vpop.f32.mrf.mxu0
    %616 = vmatprep.mubr.f32.mxu0 0.0
    %617 = vmatmul.mubr.f32.gmra.mxu0 %v535
    %v618 = vpop.f32.mrf.mxu0
    %v619 = vadd.f32 %v522, %v618
    %v620 = vpop.f32.mrf.mxu0
    %621 = vdwg.mxu0
    %s622 = scalar_lea.vmem %s1, 64
    %v623 = vld [vmem:[%s622] sm:$0xff]
    %v624 = vld [vmem:[%s622 + $0x8] sm:$0xff]
    %v625 = vld [vmem:[%s622 + $0x10] sm:$0xff]
    %v626 = vld [vmem:[%s622 + $0x18] sm:$0xff]
    %v628 = vsel %vm223, %v623, 0
    %v631 = vsel %vm223, %v624, 0
    %v634 = vsel %vm223, %v625, 0
    %v637 = vsel %vm223, %v626, 0
    %639 = vmatprep.subr.mxu0 0.0
    %640 = vmatpush1.msra.mxu0 0.0
    %641 = vmatprep.subr.mxu0 0.0
    %642 = vmatpush1.msra.mxu0 0.0
    %643 = vmatprep.subr.mxu0 0.0
    %644 = vmatpush1.msra.mxu0 0.0
    %645 = vmatprep.subr.mxu0 0.0
    %646 = vmatpush1.msra.mxu0 0.0
    %647 = vmatprep.subr.mxu0 0.0
    %648 = vmatpush1.msra.mxu0 0.0
    %649 = vmatprep.subr.mxu0 0.0
    %650 = vmatpush1.msra.mxu0 0.0
    %651 = vmatprep.subr.mxu0 0.0
    %652 = vmatpush1.msra.mxu0 0.0
    %653 = vmatprep.subr.mxu0 0.0
    %654 = vmatpush1.msra.mxu0 0.0
    %655 = vmatprep.subr.mxu0 0.0
    %656 = vmatpush1.msra.mxu0 0.0
    %657 = vmatprep.subr.mxu0 0.0
    %658 = vmatpush1.msra.mxu0 0.0
    %659 = vmatprep.subr.mxu0 0.0
    %660 = vmatpush1.msra.mxu0 0.0
    %661 = vmatprep.subr.mxu0 0.0
    %662 = vmatpush1.msra.mxu0 0.0
    %663 = vmatprep.subr.mxu0 0.0
    %664 = vmatpush1.msra.mxu0 0.0
    %665 = vmatprep.subr.mxu0 0.0
    %666 = vmatpush1.msra.mxu0 0.0
    %667 = vmatprep.subr.mxu0 0.0
    %668 = vmatpush1.msra.mxu0 0.0
    %669 = vmatprep.subr.mxu0 0.0
    %670 = vmatpush1.msra.mxu0 %v238
    %671 = vmatprep.subr.mxu0 0.0
    %672 = vmatpush2.msra.mxu0 0.0
    %673 = vmatprep.subr.mxu0 0.0
    %674 = vmatpush2.msra.mxu0 0.0
    %675 = vmatprep.subr.mxu0 0.0
    %676 = vmatpush2.msra.mxu0 0.0
    %677 = vmatprep.subr.mxu0 0.0
    %678 = vmatpush2.msra.mxu0 0.0
    %679 = vmatprep.subr.mxu0 0.0
    %680 = vmatpush2.msra.mxu0 0.0
    %681 = vmatprep.subr.mxu0 0.0
    %682 = vmatpush2.msra.mxu0 0.0
    %683 = vmatprep.subr.mxu0 0.0
    %684 = vmatpush2.msra.mxu0 0.0
    %685 = vmatprep.subr.mxu0 0.0
    %686 = vmatpush2.msra.mxu0 0.0
    %687 = vmatprep.subr.mxu0 0.0
    %688 = vmatpush2.msra.mxu0 0.0
    %689 = vmatprep.subr.mxu0 0.0
    %690 = vmatpush2.msra.mxu0 0.0
    %691 = vmatprep.subr.mxu0 0.0
    %692 = vmatpush2.msra.mxu0 0.0
    %693 = vmatprep.subr.mxu0 0.0
    %694 = vmatpush2.msra.mxu0 0.0
    %695 = vmatprep.subr.mxu0 0.0
    %696 = vmatpush2.msra.mxu0 0.0
    %697 = vmatprep.subr.mxu0 0.0
    %698 = vmatpush2.msra.mxu0 0.0
    %699 = vmatprep.subr.mxu0 0.0
    %700 = vmatpush2.msra.mxu0 0.0
    %701 = vmatprep.subr.mxu0 0.0
    %702 = vmatpush2.msra.mxu0 0.0
    %703 = vmatprep.mubr.f32.mxu0 0.0
    %704 = vmatmul.mubr.f32.gmra.mxu0 %v628
    %v705 = vpop.f32.mrf.mxu0
    %v706 = vadd.f32 0.0, %v705
    %v707 = vpop.f32.mrf.mxu0
    %708 = vmatprep.mubr.f32.mxu0 0.0
    %709 = vmatmul.mubr.f32.gmra.mxu0 %v631
    %v710 = vpop.f32.mrf.mxu0
    %v711 = vadd.f32 0.0, %v710
    %v712 = vpop.f32.mrf.mxu0
    %713 = vmatprep.mubr.f32.mxu0 0.0
    %714 = vmatmul.mubr.f32.gmra.mxu0 %v634
    %v715 = vpop.f32.mrf.mxu0
    %v716 = vadd.f32 0.0, %v715
    %v717 = vpop.f32.mrf.mxu0
    %718 = vmatprep.mubr.f32.mxu0 0.0
    %719 = vmatmul.mubr.f32.gmra.mxu0 %v637
    %v720 = vpop.f32.mrf.mxu0
    %v721 = vadd.f32 0.0, %v720
    %v722 = vpop.f32.mrf.mxu0
    %723 = vdwg.mxu0
    %v725 = vsel %vm427, %v706, 0
    %v728 = vsel %vm427, %v711, 0
    %v731 = vsel %vm427, %v716, 0
    %v734 = vsel %vm427, %v721, 0
    %736 = vmatprep.subr.mxu0 0.0
    %737 = vmatpush1.msra.mxu0 0.0
    %738 = vmatprep.subr.mxu0 0.0
    %739 = vmatpush1.msra.mxu0 0.0
    %740 = vmatprep.subr.mxu0 0.0
    %741 = vmatpush1.msra.mxu0 0.0
    %742 = vmatprep.subr.mxu0 0.0
    %743 = vmatpush1.msra.mxu0 0.0
    %744 = vmatprep.subr.mxu0 0.0
    %745 = vmatpush1.msra.mxu0 0.0
    %746 = vmatprep.subr.mxu0 0.0
    %747 = vmatpush1.msra.mxu0 0.0
    %748 = vmatprep.subr.mxu0 0.0
    %749 = vmatpush1.msra.mxu0 0.0
    %750 = vmatprep.subr.mxu0 0.0
    %751 = vmatpush1.msra.mxu0 0.0
    %752 = vmatprep.subr.mxu0 0.0
    %753 = vmatpush1.msra.mxu0 %v213
    %754 = vmatprep.subr.mxu0 0.0
    %755 = vmatpush1.msra.mxu0 %v212
    %756 = vmatprep.subr.mxu0 0.0
    %757 = vmatpush1.msra.mxu0 %v211
    %758 = vmatprep.subr.mxu0 0.0
    %759 = vmatpush1.msra.mxu0 %v210
    %760 = vmatprep.subr.mxu0 0.0
    %761 = vmatpush1.msra.mxu0 %v209
    %762 = vmatprep.subr.mxu0 0.0
    %763 = vmatpush1.msra.mxu0 %v208
    %764 = vmatprep.subr.mxu0 0.0
    %765 = vmatpush1.msra.mxu0 %v207
    %766 = vmatprep.subr.mxu0 0.0
    %767 = vmatpush1.msra.mxu0 %v206
    %768 = vmatprep.subr.mxu0 0.0
    %769 = vmatpush2.msra.mxu0 0.0
    %770 = vmatprep.subr.mxu0 0.0
    %771 = vmatpush2.msra.mxu0 0.0
    %772 = vmatprep.subr.mxu0 0.0
    %773 = vmatpush2.msra.mxu0 0.0
    %774 = vmatprep.subr.mxu0 0.0
    %775 = vmatpush2.msra.mxu0 0.0
    %776 = vmatprep.subr.mxu0 0.0
    %777 = vmatpush2.msra.mxu0 0.0
    %778 = vmatprep.subr.mxu0 0.0
    %779 = vmatpush2.msra.mxu0 0.0
    %780 = vmatprep.subr.mxu0 0.0
    %781 = vmatpush2.msra.mxu0 0.0
    %782 = vmatprep.subr.mxu0 0.0
    %783 = vmatpush2.msra.mxu0 0.0
    %784 = vmatprep.subr.mxu0 0.0
    %785 = vmatpush2.msra.mxu0 0.0
    %786 = vmatprep.subr.mxu0 0.0
    %787 = vmatpush2.msra.mxu0 0.0
    %788 = vmatprep.subr.mxu0 0.0
    %789 = vmatpush2.msra.mxu0 0.0
    %790 = vmatprep.subr.mxu0 0.0
    %791 = vmatpush2.msra.mxu0 0.0
    %792 = vmatprep.subr.mxu0 0.0
    %793 = vmatpush2.msra.mxu0 0.0
    %794 = vmatprep.subr.mxu0 0.0
    %795 = vmatpush2.msra.mxu0 0.0
    %796 = vmatprep.subr.mxu0 0.0
    %797 = vmatpush2.msra.mxu0 0.0
    %798 = vmatprep.subr.mxu0 0.0
    %799 = vmatpush2.msra.mxu0 0.0
    %800 = vmatprep.mubr.f32.mxu0 0.0
    %801 = vmatmul.mubr.f32.gmra.mxu0 %v725
    %v802 = vpop.f32.mrf.mxu0
    %v803 = vadd.f32 0.0, %v802
    %v804 = vpop.f32.mrf.mxu0
    %805 = vmatprep.mubr.f32.mxu0 0.0
    %806 = vmatmul.mubr.f32.gmra.mxu0 %v728
    %v807 = vpop.f32.mrf.mxu0
    %v808 = vadd.f32 0.0, %v807
    %v809 = vpop.f32.mrf.mxu0
    %810 = vmatprep.mubr.f32.mxu0 0.0
    %811 = vmatmul.mubr.f32.gmra.mxu0 %v731
    %v812 = vpop.f32.mrf.mxu0
    %v813 = vadd.f32 0.0, %v812
    %v814 = vpop.f32.mrf.mxu0
    %815 = vmatprep.mubr.f32.mxu0 0.0
    %816 = vmatmul.mubr.f32.gmra.mxu0 %v734
    %v817 = vpop.f32.mrf.mxu0
    %v818 = vadd.f32 0.0, %v817
    %v819 = vpop.f32.mrf.mxu0
    %820 = vdwg.mxu0
    %v821 = vadd.f32 %v604, %v803
    %v822 = vadd.f32 %v609, %v808
    %v823 = vadd.f32 %v614, %v813
    %v824 = vadd.f32 %v619, %v818
    %826 = vset.pattern.permute.xlu0 0
    %827 = vperm.xlu0 %826, %v214
    %v828 = vpop.permute.xlu0 %827
    %831 = vset.pattern.permute.xlu0 0
    %832 = vperm.xlu0 %831, %v215
    %v833 = vpop.permute.xlu0 %832
    %836 = vset.pattern.permute.xlu0 0
    %837 = vperm.xlu0 %836, %v216
    %v838 = vpop.permute.xlu0 %837
    %841 = vset.pattern.permute.xlu0 0
    %842 = vperm.xlu0 %841, %v217
    %v843 = vpop.permute.xlu0 %842
    %v845 = vadd.f32 %v821, %v828
    %v846 = vadd.f32 %v822, %v833
    %v847 = vadd.f32 %v823, %v838
    %v848 = vadd.f32 %v824, %v843
    %849 = vadd.xlane.f32.xlu0 %v845
    %v850 = vpop.xlane.xlu0 %849
    %851 = vadd.xlane.f32.xlu0 %v846
    %v852 = vpop.xlane.xlu0 %851
    %853 = vadd.xlane.f32.xlu0 %v847
    %v854 = vpop.xlane.xlu0 %853
    %855 = vadd.xlane.f32.xlu0 %v848
    %v856 = vpop.xlane.xlu0 %855
    %v857 = vrcp.pop 128.0
    %v858 = vmul.f32 %v850, %v857
    %v859 = vmul.f32 %v852, %v857
    %v860 = vmul.f32 %v854, %v857
    %v861 = vmul.f32 %v856, %v857
    %v862 = vsub.f32 %v845, %v858
    %v863 = vsub.f32 %v846, %v859
    %v864 = vsub.f32 %v847, %v860
    %v865 = vsub.f32 %v848, %v861
    %v866 = vmul.f32 %v862, %v862
    %v867 = vmul.f32 %v863, %v863
    %v868 = vmul.f32 %v864, %v864
    %v869 = vmul.f32 %v865, %v865
    %870 = vadd.xlane.f32.xlu0 %v866
    %v871 = vpop.xlane.xlu0 %870
    %872 = vadd.xlane.f32.xlu0 %v867
    %v873 = vpop.xlane.xlu0 %872
    %874 = vadd.xlane.f32.xlu0 %v868
    %v875 = vpop.xlane.xlu0 %874
    %876 = vadd.xlane.f32.xlu0 %v869
    %v877 = vpop.xlane.xlu0 %876
    %v878 = vmul.f32 %v871, %v857
    %v879 = vmul.f32 %v873, %v857
    %v880 = vmul.f32 %v875, %v857
    %v881 = vmul.f32 %v877, %v857
    %v882 = vadd.f32 %v878, 1e-05
    %v883 = vadd.f32 %v879, 1e-05
    %v884 = vadd.f32 %v880, 1e-05
    %v885 = vadd.f32 %v881, 1e-05
    %v886 = vrsqrt.pop %v882
    %v887 = vrsqrt.pop %v883
    %v888 = vrsqrt.pop %v884
    %v889 = vrsqrt.pop %v885
    %v890 = vmul.f32 %v862, %v886
    %v891 = vmul.f32 %v863, %v887
    %v892 = vmul.f32 %v864, %v888
    %v893 = vmul.f32 %v865, %v889
    %v894 = vmul.f32 %v890, 0.5
    %v895 = vmul.f32 %v891, 0.5
    %v896 = vmul.f32 %v892, 0.5
    %v897 = vmul.f32 %v893, 0.5
    %v898 = vmul.f32 %v890, 0.70710677
    %v899 = vmul.f32 %v891, 0.70710677
    %v900 = vmul.f32 %v892, 0.70710677
    %v901 = vmul.f32 %v893, 0.70710677
    %v902 = vand.u32 2147483647, %v898
    %v903 = vand.u32 2147483647, %v899
    %v904 = vand.u32 2147483647, %v900
    %v905 = vand.u32 2147483647, %v901
    %v906 = vmul.f32 %v902, 0.3275911
    %v907 = vmul.f32 %v903, 0.3275911
    %v908 = vmul.f32 %v904, 0.3275911
    %v909 = vmul.f32 %v905, 0.3275911
    %v910 = vadd.f32 %v906, 1.0
    %v911 = vadd.f32 %v907, 1.0
    %v912 = vadd.f32 %v908, 1.0
    %v913 = vadd.f32 %v909, 1.0
    %v914 = vrcp.pop %v910
    %v915 = vmul.f32 1.0, %v914
    %v916 = vrcp.pop %v911
    %v917 = vmul.f32 1.0, %v916
    %v918 = vrcp.pop %v912
    %v919 = vmul.f32 1.0, %v918
    %v920 = vrcp.pop %v913
    %v921 = vmul.f32 1.0, %v920
    %v922 = vmul.f32 %v915, 1.0614054
    %v923 = vmul.f32 %v917, 1.0614054
    %v924 = vmul.f32 %v919, 1.0614054
    %v925 = vmul.f32 %v921, 1.0614054
    %v926 = vadd.f32 %v922, -1.4531521
    %v927 = vadd.f32 %v923, -1.4531521
    %v928 = vadd.f32 %v924, -1.4531521
    %v929 = vadd.f32 %v925, -1.4531521
    %v930 = vmul.f32 %v926, %v915
    %v931 = vmul.f32 %v927, %v917
    %v932 = vmul.f32 %v928, %v919
    %v933 = vmul.f32 %v929, %v921
    %v934 = vadd.f32 %v930, 1.4214138
    %v935 = vadd.f32 %v931, 1.4214138
    %v936 = vadd.f32 %v932, 1.4214138
    %v937 = vadd.f32 %v933, 1.4214138
    %v938 = vmul.f32 %v934, %v915
    %v939 = vmul.f32 %v935, %v917
    %v940 = vmul.f32 %v936, %v919
    %v941 = vmul.f32 %v937, %v921
    %v942 = vadd.f32 %v938, -0.28449672
    %v943 = vadd.f32 %v939, -0.28449672
    %v944 = vadd.f32 %v940, -0.28449672
    %v945 = vadd.f32 %v941, -0.28449672
    %v946 = vmul.f32 %v942, %v915
    %v947 = vmul.f32 %v943, %v917
    %v948 = vmul.f32 %v944, %v919
    %v949 = vmul.f32 %v945, %v921
    %v950 = vadd.f32 %v946, 0.2548296
    %v951 = vadd.f32 %v947, 0.2548296
    %v952 = vadd.f32 %v948, 0.2548296
    %v953 = vadd.f32 %v949, 0.2548296
    %v954 = vmul.f32 %v950, %v915
    %v955 = vmul.f32 %v951, %v917
    %v956 = vmul.f32 %v952, %v919
    %v957 = vmul.f32 %v953, %v921
    %v958 = vsub.f32 0.0, %v902
    %v959 = vsub.f32 0.0, %v903
    %v960 = vsub.f32 0.0, %v904
    %v961 = vsub.f32 0.0, %v905
    %v962 = vmul.f32 %v958, %v902
    %v963 = vmul.f32 %v959, %v903
    %v964 = vmul.f32 %v960, %v904
    %v965 = vmul.f32 %v961, %v905
    %v966 = vmul.f32 %v962, 1.442695
    %v967 = vpow.pop %v966
    %v968 = vmul.f32 %v963, 1.442695
    %v969 = vpow.pop %v968
    %v970 = vmul.f32 %v964, 1.442695
    %v971 = vpow.pop %v970
    %v972 = vmul.f32 %v965, 1.442695
    %v973 = vpow.pop %v972
    %v974 = vmul.f32 %v954, %v967
    %v975 = vmul.f32 %v955, %v969
    %v976 = vmul.f32 %v956, %v971
    %v977 = vmul.f32 %v957, %v973
    %v978 = vsub.f32 1.0, %v974
    %v979 = vsub.f32 1.0, %v975
    %v980 = vsub.f32 1.0, %v976
    %v981 = vsub.f32 1.0, %v977
    %vm982 = vcmp.ge.f32.partialorder %v898, 0.0
    %vm983 = vcmp.ge.f32.partialorder %v899, 0.0
    %vm984 = vcmp.ge.f32.partialorder %v900, 0.0
    %vm985 = vcmp.ge.f32.partialorder %v901, 0.0
    %v986 = vsub.f32 0.0, %v978
    %v987 = vsub.f32 0.0, %v979
    %v988 = vsub.f32 0.0, %v980
    %v989 = vsub.f32 0.0, %v981
    %v990 = vsel %vm982, %v978, %v986
    %v991 = vsel %vm983, %v979, %v987
    %v992 = vsel %vm984, %v980, %v988
    %v993 = vsel %vm985, %v981, %v989
    %v994 = vadd.f32 %v990, 1.0
    %v995 = vadd.f32 %v991, 1.0
    %v996 = vadd.f32 %v992, 1.0
    %v997 = vadd.f32 %v993, 1.0
    %v998 = vmul.f32 %v894, %v994
    %v999 = vmul.f32 %v895, %v995
    %v1000 = vmul.f32 %v896, %v996
    %v1001 = vmul.f32 %v897, %v997
    %1002 = vst [vmem:[#allocation2] sm:$0xff] %v998
    %1003 = vst [vmem:[#allocation2 + $0x8] sm:$0xff] %v999
    %1004 = vst [vmem:[#allocation2 + $0x10] sm:$0xff] %v1000
    %1005 = vst [vmem:[#allocation2 + $0x18] sm:$0xff] %v1001
    %s1006 = scalar_lea.vmem %s0, 4
    %v1007 = vld [vmem:[%s1006] sm:$0xf]
    %v1008 = vld [vmem:[%s1] sm:$0xff]
    %v1009 = vld [vmem:[%s1 + $0x8] sm:$0xff]
    %v1010 = vld [vmem:[%s1 + $0x10] sm:$0xff]
    %v1011 = vld [vmem:[%s1 + $0x18] sm:$0xff]
    %v1013 = vsel %vm223, %v1008, 0
    %v1016 = vsel %vm223, %v1009, 0
    %v1019 = vsel %vm223, %v1010, 0
    %v1022 = vsel %vm223, %v1011, 0
    %v1025 = vsel %vm236, %v1007, 0
    %1027 = vmatprep.subr.mxu0 0.0
    %1028 = vmatpush1.msra.mxu0 0.0
    %1029 = vmatprep.subr.mxu0 0.0
    %1030 = vmatpush1.msra.mxu0 0.0
    %1031 = vmatprep.subr.mxu0 0.0
    %1032 = vmatpush1.msra.mxu0 0.0
    %1033 = vmatprep.subr.mxu0 0.0
    %1034 = vmatpush1.msra.mxu0 0.0
    %1035 = vmatprep.subr.mxu0 0.0
    %1036 = vmatpush1.msra.mxu0 0.0
    %1037 = vmatprep.subr.mxu0 0.0
    %1038 = vmatpush1.msra.mxu0 0.0
    %1039 = vmatprep.subr.mxu0 0.0
    %1040 = vmatpush1.msra.mxu0 0.0
    %1041 = vmatprep.subr.mxu0 0.0
    %1042 = vmatpush1.msra.mxu0 0.0
    %1043 = vmatprep.subr.mxu0 0.0
    %1044 = vmatpush1.msra.mxu0 0.0
    %1045 = vmatprep.subr.mxu0 0.0
    %1046 = vmatpush1.msra.mxu0 0.0
    %1047 = vmatprep.subr.mxu0 0.0
    %1048 = vmatpush1.msra.mxu0 0.0
    %1049 = vmatprep.subr.mxu0 0.0
    %1050 = vmatpush1.msra.mxu0 0.0
    %1051 = vmatprep.subr.mxu0 0.0
    %1052 = vmatpush1.msra.mxu0 0.0
    %1053 = vmatprep.subr.mxu0 0.0
    %1054 = vmatpush1.msra.mxu0 0.0
    %1055 = vmatprep.subr.mxu0 0.0
    %1056 = vmatpush1.msra.mxu0 0.0
    %1057 = vmatprep.subr.mxu0 0.0
    %1058 = vmatpush1.msra.mxu0 %v1025
    %1059 = vmatprep.subr.mxu0 0.0
    %1060 = vmatpush2.msra.mxu0 0.0
    %1061 = vmatprep.subr.mxu0 0.0
    %1062 = vmatpush2.msra.mxu0 0.0
    %1063 = vmatprep.subr.mxu0 0.0
    %1064 = vmatpush2.msra.mxu0 0.0
    %1065 = vmatprep.subr.mxu0 0.0
    %1066 = vmatpush2.msra.mxu0 0.0
    %1067 = vmatprep.subr.mxu0 0.0
    %1068 = vmatpush2.msra.mxu0 0.0
    %1069 = vmatprep.subr.mxu0 0.0
    %1070 = vmatpush2.msra.mxu0 0.0
    %1071 = vmatprep.subr.mxu0 0.0
    %1072 = vmatpush2.msra.mxu0 0.0
    %1073 = vmatprep.subr.mxu0 0.0
    %1074 = vmatpush2.msra.mxu0 0.0
    %1075 = vmatprep.subr.mxu0 0.0
    %1076 = vmatpush2.msra.mxu0 0.0
    %1077 = vmatprep.subr.mxu0 0.0
    %1078 = vmatpush2.msra.mxu0 0.0
    %1079 = vmatprep.subr.mxu0 0.0
    %1080 = vmatpush2.msra.mxu0 0.0
    %1081 = vmatprep.subr.mxu0 0.0
    %1082 = vmatpush2.msra.mxu0 0.0
    %1083 = vmatprep.subr.mxu0 0.0
    %1084 = vmatpush2.msra.mxu0 0.0
    %1085 = vmatprep.subr.mxu0 0.0
    %1086 = vmatpush2.msra.mxu0 0.0
    %1087 = vmatprep.subr.mxu0 0.0
    %1088 = vmatpush2.msra.mxu0 0.0
    %1089 = vmatprep.subr.mxu0 0.0
    %1090 = vmatpush2.msra.mxu0 0.0
    %1091 = vmatprep.mubr.f32.mxu0 0.0
    %1092 = vmatmul.mubr.f32.gmra.mxu0 %v1013
    %v1093 = vpop.f32.mrf.mxu0
    %v1094 = vadd.f32 0.0, %v1093
    %v1095 = vpop.f32.mrf.mxu0
    %1096 = vmatprep.mubr.f32.mxu0 0.0
    %1097 = vmatmul.mubr.f32.gmra.mxu0 %v1016
    %v1098 = vpop.f32.mrf.mxu0
    %v1099 = vadd.f32 0.0, %v1098
    %v1100 = vpop.f32.mrf.mxu0
    %1101 = vmatprep.mubr.f32.mxu0 0.0
    %1102 = vmatmul.mubr.f32.gmra.mxu0 %v1019
    %v1103 = vpop.f32.mrf.mxu0
    %v1104 = vadd.f32 0.0, %v1103
    %v1105 = vpop.f32.mrf.mxu0
    %1106 = vmatprep.mubr.f32.mxu0 0.0
    %1107 = vmatmul.mubr.f32.gmra.mxu0 %v1022
    %v1108 = vpop.f32.mrf.mxu0
    %v1109 = vadd.f32 0.0, %v1108
    %v1110 = vpop.f32.mrf.mxu0
    %1111 = vdwg.mxu0
    %v1112 = vld [vmem:[%s325] sm:$0xff]
    %v1113 = vld [vmem:[%s325 + $0x8] sm:$0xff]
    %v1114 = vld [vmem:[%s325 + $0x10] sm:$0xff]
    %v1115 = vld [vmem:[%s325 + $0x18] sm:$0xff]
    %v1117 = vsel %vm223, %v1112, 0
    %v1120 = vsel %vm223, %v1113, 0
    %v1123 = vsel %vm223, %v1114, 0
    %v1126 = vsel %vm223, %v1115, 0
    %1128 = vmatprep.subr.mxu0 0.0
    %1129 = vmatpush1.msra.mxu0 0.0
    %1130 = vmatprep.subr.mxu0 0.0
    %1131 = vmatpush1.msra.mxu0 0.0
    %1132 = vmatprep.subr.mxu0 0.0
    %1133 = vmatpush1.msra.mxu0 0.0
    %1134 = vmatprep.subr.mxu0 0.0
    %1135 = vmatpush1.msra.mxu0 0.0
    %1136 = vmatprep.subr.mxu0 0.0
    %1137 = vmatpush1.msra.mxu0 0.0
    %1138 = vmatprep.subr.mxu0 0.0
    %1139 = vmatpush1.msra.mxu0 0.0
    %1140 = vmatprep.subr.mxu0 0.0
    %1141 = vmatpush1.msra.mxu0 0.0
    %1142 = vmatprep.subr.mxu0 0.0
    %1143 = vmatpush1.msra.mxu0 0.0
    %1144 = vmatprep.subr.mxu0 0.0
    %1145 = vmatpush1.msra.mxu0 0.0
    %1146 = vmatprep.subr.mxu0 0.0
    %1147 = vmatpush1.msra.mxu0 0.0
    %1148 = vmatprep.subr.mxu0 0.0
    %1149 = vmatpush1.msra.mxu0 0.0
    %1150 = vmatprep.subr.mxu0 0.0
    %1151 = vmatpush1.msra.mxu0 0.0
    %1152 = vmatprep.subr.mxu0 0.0
    %1153 = vmatpush1.msra.mxu0 0.0
    %1154 = vmatprep.subr.mxu0 0.0
    %1155 = vmatpush1.msra.mxu0 0.0
    %1156 = vmatprep.subr.mxu0 0.0
    %1157 = vmatpush1.msra.mxu0 0.0
    %1158 = vmatprep.subr.mxu0 0.0
    %1159 = vmatpush1.msra.mxu0 %v1025
    %1160 = vmatprep.subr.mxu0 0.0
    %1161 = vmatpush2.msra.mxu0 0.0
    %1162 = vmatprep.subr.mxu0 0.0
    %1163 = vmatpush2.msra.mxu0 0.0
    %1164 = vmatprep.subr.mxu0 0.0
    %1165 = vmatpush2.msra.mxu0 0.0
    %1166 = vmatprep.subr.mxu0 0.0
    %1167 = vmatpush2.msra.mxu0 0.0
    %1168 = vmatprep.subr.mxu0 0.0
    %1169 = vmatpush2.msra.mxu0 0.0
    %1170 = vmatprep.subr.mxu0 0.0
    %1171 = vmatpush2.msra.mxu0 0.0
    %1172 = vmatprep.subr.mxu0 0.0
    %1173 = vmatpush2.msra.mxu0 0.0
    %1174 = vmatprep.subr.mxu0 0.0
    %1175 = vmatpush2.msra.mxu0 0.0
    %1176 = vmatprep.subr.mxu0 0.0
    %1177 = vmatpush2.msra.mxu0 0.0
    %1178 = vmatprep.subr.mxu0 0.0
    %1179 = vmatpush2.msra.mxu0 0.0
    %1180 = vmatprep.subr.mxu0 0.0
    %1181 = vmatpush2.msra.mxu0 0.0
    %1182 = vmatprep.subr.mxu0 0.0
    %1183 = vmatpush2.msra.mxu0 0.0
    %1184 = vmatprep.subr.mxu0 0.0
    %1185 = vmatpush2.msra.mxu0 0.0
    %1186 = vmatprep.subr.mxu0 0.0
    %1187 = vmatpush2.msra.mxu0 0.0
    %1188 = vmatprep.subr.mxu0 0.0
    %1189 = vmatpush2.msra.mxu0 0.0
    %1190 = vmatprep.subr.mxu0 0.0
    %1191 = vmatpush2.msra.mxu0 0.0
    %1192 = vmatprep.mubr.f32.mxu0 0.0
    %1193 = vmatmul.mubr.f32.gmra.mxu0 %v1117
    %v1194 = vpop.f32.mrf.mxu0
    %v1195 = vadd.f32 0.0, %v1194
    %v1196 = vpop.f32.mrf.mxu0
    %1197 = vmatprep.mubr.f32.mxu0 0.0
    %1198 = vmatmul.mubr.f32.gmra.mxu0 %v1120
    %v1199 = vpop.f32.mrf.mxu0
    %v1200 = vadd.f32 0.0, %v1199
    %v1201 = vpop.f32.mrf.mxu0
    %1202 = vmatprep.mubr.f32.mxu0 0.0
    %1203 = vmatmul.mubr.f32.gmra.mxu0 %v1123
    %v1204 = vpop.f32.mrf.mxu0
    %v1205 = vadd.f32 0.0, %v1204
    %v1206 = vpop.f32.mrf.mxu0
    %1207 = vmatprep.mubr.f32.mxu0 0.0
    %1208 = vmatmul.mubr.f32.gmra.mxu0 %v1126
    %v1209 = vpop.f32.mrf.mxu0
    %v1210 = vadd.f32 0.0, %v1209
    %v1211 = vpop.f32.mrf.mxu0
    %1212 = vdwg.mxu0
    %v1214 = vsel %vm427, %v1195, 0
    %v1217 = vsel %vm427, %v1200, 0
    %v1220 = vsel %vm427, %v1205, 0
    %v1223 = vsel %vm427, %v1210, 0
    %1225 = vmatprep.subr.mxu0 0.0
    %1226 = vmatpush1.msra.mxu0 0.0
    %1227 = vmatprep.subr.mxu0 0.0
    %1228 = vmatpush1.msra.mxu0 0.0
    %1229 = vmatprep.subr.mxu0 0.0
    %1230 = vmatpush1.msra.mxu0 0.0
    %1231 = vmatprep.subr.mxu0 0.0
    %1232 = vmatpush1.msra.mxu0 0.0
    %1233 = vmatprep.subr.mxu0 0.0
    %1234 = vmatpush1.msra.mxu0 0.0
    %1235 = vmatprep.subr.mxu0 0.0
    %1236 = vmatpush1.msra.mxu0 0.0
    %1237 = vmatprep.subr.mxu0 0.0
    %1238 = vmatpush1.msra.mxu0 0.0
    %1239 = vmatprep.subr.mxu0 0.0
    %1240 = vmatpush1.msra.mxu0 0.0
    %1241 = vmatprep.subr.mxu0 0.0
    %1242 = vmatpush1.msra.mxu0 %v150
    %1243 = vmatprep.subr.mxu0 0.0
    %1244 = vmatpush1.msra.mxu0 %v149
    %1245 = vmatprep.subr.mxu0 0.0
    %1246 = vmatpush1.msra.mxu0 %v148
    %1247 = vmatprep.subr.mxu0 0.0
    %1248 = vmatpush1.msra.mxu0 %v147
    %1249 = vmatprep.subr.mxu0 0.0
    %1250 = vmatpush1.msra.mxu0 %v146
    %1251 = vmatprep.subr.mxu0 0.0
    %1252 = vmatpush1.msra.mxu0 %v145
    %1253 = vmatprep.subr.mxu0 0.0
    %1254 = vmatpush1.msra.mxu0 %v144
    %1255 = vmatprep.subr.mxu0 0.0
    %1256 = vmatpush1.msra.mxu0 %v143
    %1257 = vmatprep.subr.mxu0 0.0
    %1258 = vmatpush2.msra.mxu0 0.0
    %1259 = vmatprep.subr.mxu0 0.0
    %1260 = vmatpush2.msra.mxu0 0.0
    %1261 = vmatprep.subr.mxu0 0.0
    %1262 = vmatpush2.msra.mxu0 0.0
    %1263 = vmatprep.subr.mxu0 0.0
    %1264 = vmatpush2.msra.mxu0 0.0
    %1265 = vmatprep.subr.mxu0 0.0
    %1266 = vmatpush2.msra.mxu0 0.0
    %1267 = vmatprep.subr.mxu0 0.0
    %1268 = vmatpush2.msra.mxu0 0.0
    %1269 = vmatprep.subr.mxu0 0.0
    %1270 = vmatpush2.msra.mxu0 0.0
    %1271 = vmatprep.subr.mxu0 0.0
    %1272 = vmatpush2.msra.mxu0 0.0
    %1273 = vmatprep.subr.mxu0 0.0
    %1274 = vmatpush2.msra.mxu0 0.0
    %1275 = vmatprep.subr.mxu0 0.0
    %1276 = vmatpush2.msra.mxu0 0.0
    %1277 = vmatprep.subr.mxu0 0.0
    %1278 = vmatpush2.msra.mxu0 0.0
    %1279 = vmatprep.subr.mxu0 0.0
    %1280 = vmatpush2.msra.mxu0 0.0
    %1281 = vmatprep.subr.mxu0 0.0
    %1282 = vmatpush2.msra.mxu0 0.0
    %1283 = vmatprep.subr.mxu0 0.0
    %1284 = vmatpush2.msra.mxu0 0.0
    %1285 = vmatprep.subr.mxu0 0.0
    %1286 = vmatpush2.msra.mxu0 0.0
    %1287 = vmatprep.subr.mxu0 0.0
    %1288 = vmatpush2.msra.mxu0 0.0
    %1289 = vmatprep.mubr.f32.mxu0 0.0
    %1290 = vmatmul.mubr.f32.gmra.mxu0 %v1214
    %v1291 = vpop.f32.mrf.mxu0
    %v1292 = vadd.f32 0.0, %v1291
    %v1293 = vpop.f32.mrf.mxu0
    %1294 = vmatprep.mubr.f32.mxu0 0.0
    %1295 = vmatmul.mubr.f32.gmra.mxu0 %v1217
    %v1296 = vpop.f32.mrf.mxu0
    %v1297 = vadd.f32 0.0, %v1296
    %v1298 = vpop.f32.mrf.mxu0
    %1299 = vmatprep.mubr.f32.mxu0 0.0
    %1300 = vmatmul.mubr.f32.gmra.mxu0 %v1220
    %v1301 = vpop.f32.mrf.mxu0
    %v1302 = vadd.f32 0.0, %v1301
    %v1303 = vpop.f32.mrf.mxu0
    %1304 = vmatprep.mubr.f32.mxu0 0.0
    %1305 = vmatmul.mubr.f32.gmra.mxu0 %v1223
    %v1306 = vpop.f32.mrf.mxu0
    %v1307 = vadd.f32 0.0, %v1306
    %v1308 = vpop.f32.mrf.mxu0
    %1309 = vdwg.mxu0
    %v1311 = vsel %vm427, %v1094, 0
    %v1314 = vsel %vm427, %v1099, 0
    %v1317 = vsel %vm427, %v1104, 0
    %v1320 = vsel %vm427, %v1109, 0
    %1322 = vmatprep.subr.mxu0 0.0
    %1323 = vmatpush1.msra.mxu0 0.0
    %1324 = vmatprep.subr.mxu0 0.0
    %1325 = vmatpush1.msra.mxu0 0.0
    %1326 = vmatprep.subr.mxu0 0.0
    %1327 = vmatpush1.msra.mxu0 0.0
    %1328 = vmatprep.subr.mxu0 0.0
    %1329 = vmatpush1.msra.mxu0 0.0
    %1330 = vmatprep.subr.mxu0 0.0
    %1331 = vmatpush1.msra.mxu0 0.0
    %1332 = vmatprep.subr.mxu0 0.0
    %1333 = vmatpush1.msra.mxu0 0.0
    %1334 = vmatprep.subr.mxu0 0.0
    %1335 = vmatpush1.msra.mxu0 0.0
    %1336 = vmatprep.subr.mxu0 0.0
    %1337 = vmatpush1.msra.mxu0 0.0
    %1338 = vmatprep.subr.mxu0 0.0
    %1339 = vmatpush1.msra.mxu0 %v88
    %1340 = vmatprep.subr.mxu0 0.0
    %1341 = vmatpush1.msra.mxu0 %v87
    %1342 = vmatprep.subr.mxu0 0.0
    %1343 = vmatpush1.msra.mxu0 %v86
    %1344 = vmatprep.subr.mxu0 0.0
    %1345 = vmatpush1.msra.mxu0 %v85
    %1346 = vmatprep.subr.mxu0 0.0
    %1347 = vmatpush1.msra.mxu0 %v84
    %1348 = vmatprep.subr.mxu0 0.0
    %1349 = vmatpush1.msra.mxu0 %v83
    %1350 = vmatprep.subr.mxu0 0.0
    %1351 = vmatpush1.msra.mxu0 %v82
    %1352 = vmatprep.subr.mxu0 0.0
    %1353 = vmatpush1.msra.mxu0 %v81
    %1354 = vmatprep.subr.mxu0 0.0
    %1355 = vmatpush2.msra.mxu0 0.0
    %1356 = vmatprep.subr.mxu0 0.0
    %1357 = vmatpush2.msra.mxu0 0.0
    %1358 = vmatprep.subr.mxu0 0.0
    %1359 = vmatpush2.msra.mxu0 0.0
    %1360 = vmatprep.subr.mxu0 0.0
    %1361 = vmatpush2.msra.mxu0 0.0
    %1362 = vmatprep.subr.mxu0 0.0
    %1363 = vmatpush2.msra.mxu0 0.0
    %1364 = vmatprep.subr.mxu0 0.0
    %1365 = vmatpush2.msra.mxu0 0.0
    %1366 = vmatprep.subr.mxu0 0.0
    %1367 = vmatpush2.msra.mxu0 0.0
    %1368 = vmatprep.subr.mxu0 0.0
    %1369 = vmatpush2.msra.mxu0 0.0
    %1370 = vmatprep.subr.mxu0 0.0
    %1371 = vmatpush2.msra.mxu0 0.0
    %1372 = vmatprep.subr.mxu0 0.0
    %1373 = vmatpush2.msra.mxu0 0.0
    %1374 = vmatprep.subr.mxu0 0.0
    %1375 = vmatpush2.msra.mxu0 0.0
    %1376 = vmatprep.subr.mxu0 0.0
    %1377 = vmatpush2.msra.mxu0 0.0
    %1378 = vmatprep.subr.mxu0 0.0
    %1379 = vmatpush2.msra.mxu0 0.0
    %1380 = vmatprep.subr.mxu0 0.0
    %1381 = vmatpush2.msra.mxu0 0.0
    %1382 = vmatprep.subr.mxu0 0.0
    %1383 = vmatpush2.msra.mxu0 0.0
    %1384 = vmatprep.subr.mxu0 0.0
    %1385 = vmatpush2.msra.mxu0 0.0
    %1386 = vmatprep.mubr.f32.mxu0 0.0
    %1387 = vmatmul.mubr.f32.gmra.mxu0 %v1311
    %v1388 = vpop.f32.mrf.mxu0
    %v1389 = vadd.f32 %v1292, %v1388
    %v1390 = vpop.f32.mrf.mxu0
    %1391 = vmatprep.mubr.f32.mxu0 0.0
    %1392 = vmatmul.mubr.f32.gmra.mxu0 %v1314
    %v1393 = vpop.f32.mrf.mxu0
    %v1394 = vadd.f32 %v1297, %v1393
    %v1395 = vpop.f32.mrf.mxu0
    %1396 = vmatprep.mubr.f32.mxu0 0.0
    %1397 = vmatmul.mubr.f32.gmra.mxu0 %v1317
    %v1398 = vpop.f32.mrf.mxu0
    %v1399 = vadd.f32 %v1302, %v1398
    %v1400 = vpop.f32.mrf.mxu0
    %1401 = vmatprep.mubr.f32.mxu0 0.0
    %1402 = vmatmul.mubr.f32.gmra.mxu0 %v1320
    %v1403 = vpop.f32.mrf.mxu0
    %v1404 = vadd.f32 %v1307, %v1403
    %v1405 = vpop.f32.mrf.mxu0
    %1406 = vdwg.mxu0
    %v1407 = vld [vmem:[%s622] sm:$0xff]
    %v1408 = vld [vmem:[%s622 + $0x8] sm:$0xff]
    %v1409 = vld [vmem:[%s622 + $0x10] sm:$0xff]
    %v1410 = vld [vmem:[%s622 + $0x18] sm:$0xff]
    %v1412 = vsel %vm223, %v1407, 0
    %v1415 = vsel %vm223, %v1408, 0
    %v1418 = vsel %vm223, %v1409, 0
    %v1421 = vsel %vm223, %v1410, 0
    %1423 = vmatprep.subr.mxu0 0.0
    %1424 = vmatpush1.msra.mxu0 0.0
    %1425 = vmatprep.subr.mxu0 0.0
    %1426 = vmatpush1.msra.mxu0 0.0
    %1427 = vmatprep.subr.mxu0 0.0
    %1428 = vmatpush1.msra.mxu0 0.0
    %1429 = vmatprep.subr.mxu0 0.0
    %1430 = vmatpush1.msra.mxu0 0.0
    %1431 = vmatprep.subr.mxu0 0.0
    %1432 = vmatpush1.msra.mxu0 0.0
    %1433 = vmatprep.subr.mxu0 0.0
    %1434 = vmatpush1.msra.mxu0 0.0
    %1435 = vmatprep.subr.mxu0 0.0
    %1436 = vmatpush1.msra.mxu0 0.0
    %1437 = vmatprep.subr.mxu0 0.0
    %1438 = vmatpush1.msra.mxu0 0.0
    %1439 = vmatprep.subr.mxu0 0.0
    %1440 = vmatpush1.msra.mxu0 0.0
    %1441 = vmatprep.subr.mxu0 0.0
    %1442 = vmatpush1.msra.mxu0 0.0
    %1443 = vmatprep.subr.mxu0 0.0
    %1444 = vmatpush1.msra.mxu0 0.0
    %1445 = vmatprep.subr.mxu0 0.0
    %1446 = vmatpush1.msra.mxu0 0.0
    %1447 = vmatprep.subr.mxu0 0.0
    %1448 = vmatpush1.msra.mxu0 0.0
    %1449 = vmatprep.subr.mxu0 0.0
    %1450 = vmatpush1.msra.mxu0 0.0
    %1451 = vmatprep.subr.mxu0 0.0
    %1452 = vmatpush1.msra.mxu0 0.0
    %1453 = vmatprep.subr.mxu0 0.0
    %1454 = vmatpush1.msra.mxu0 %v1025
    %1455 = vmatprep.subr.mxu0 0.0
    %1456 = vmatpush2.msra.mxu0 0.0
    %1457 = vmatprep.subr.mxu0 0.0
    %1458 = vmatpush2.msra.mxu0 0.0
    %1459 = vmatprep.subr.mxu0 0.0
    %1460 = vmatpush2.msra.mxu0 0.0
    %1461 = vmatprep.subr.mxu0 0.0
    %1462 = vmatpush2.msra.mxu0 0.0
    %1463 = vmatprep.subr.mxu0 0.0
    %1464 = vmatpush2.msra.mxu0 0.0
    %1465 = vmatprep.subr.mxu0 0.0
    %1466 = vmatpush2.msra.mxu0 0.0
    %1467 = vmatprep.subr.mxu0 0.0
    %1468 = vmatpush2.msra.mxu0 0.0
    %1469 = vmatprep.subr.mxu0 0.0
    %1470 = vmatpush2.msra.mxu0 0.0
    %1471 = vmatprep.subr.mxu0 0.0
    %1472 = vmatpush2.msra.mxu0 0.0
    %1473 = vmatprep.subr.mxu0 0.0
    %1474 = vmatpush2.msra.mxu0 0.0
    %1475 = vmatprep.subr.mxu0 0.0
    %1476 = vmatpush2.msra.mxu0 0.0
    %1477 = vmatprep.subr.mxu0 0.0
    %1478 = vmatpush2.msra.mxu0 0.0
    %1479 = vmatprep.subr.mxu0 0.0
    %1480 = vmatpush2.msra.mxu0 0.0
    %1481 = vmatprep.subr.mxu0 0.0
    %1482 = vmatpush2.msra.mxu0 0.0
    %1483 = vmatprep.subr.mxu0 0.0
    %1484 = vmatpush2.msra.mxu0 0.0
    %1485 = vmatprep.subr.mxu0 0.0
    %1486 = vmatpush2.msra.mxu0 0.0
    %1487 = vmatprep.mubr.f32.mxu0 0.0
    %1488 = vmatmul.mubr.f32.gmra.mxu0 %v1412
    %v1489 = vpop.f32.mrf.mxu0
    %v1490 = vadd.f32 0.0, %v1489
    %v1491 = vpop.f32.mrf.mxu0
    %1492 = vmatprep.mubr.f32.mxu0 0.0
    %1493 = vmatmul.mubr.f32.gmra.mxu0 %v1415
    %v1494 = vpop.f32.mrf.mxu0
    %v1495 = vadd.f32 0.0, %v1494
    %v1496 = vpop.f32.mrf.mxu0
    %1497 = vmatprep.mubr.f32.mxu0 0.0
    %1498 = vmatmul.mubr.f32.gmra.mxu0 %v1418
    %v1499 = vpop.f32.mrf.mxu0
    %v1500 = vadd.f32 0.0, %v1499
    %v1501 = vpop.f32.mrf.mxu0
    %1502 = vmatprep.mubr.f32.mxu0 0.0
    %1503 = vmatmul.mubr.f32.gmra.mxu0 %v1421
    %v1504 = vpop.f32.mrf.mxu0
    %v1505 = vadd.f32 0.0, %v1504
    %v1506 = vpop.f32.mrf.mxu0
    %1507 = vdwg.mxu0
    %v1509 = vsel %vm427, %v1490, 0
    %v1512 = vsel %vm427, %v1495, 0
    %v1515 = vsel %vm427, %v1500, 0
    %v1518 = vsel %vm427, %v1505, 0
    %1520 = vmatprep.subr.mxu0 0.0
    %1521 = vmatpush1.msra.mxu0 0.0
    %1522 = vmatprep.subr.mxu0 0.0
    %1523 = vmatpush1.msra.mxu0 0.0
    %1524 = vmatprep.subr.mxu0 0.0
    %1525 = vmatpush1.msra.mxu0 0.0
    %1526 = vmatprep.subr.mxu0 0.0
    %1527 = vmatpush1.msra.mxu0 0.0
    %1528 = vmatprep.subr.mxu0 0.0
    %1529 = vmatpush1.msra.mxu0 0.0
    %1530 = vmatprep.subr.mxu0 0.0
    %1531 = vmatpush1.msra.mxu0 0.0
    %1532 = vmatprep.subr.mxu0 0.0
    %1533 = vmatpush1.msra.mxu0 0.0
    %1534 = vmatprep.subr.mxu0 0.0
    %1535 = vmatpush1.msra.mxu0 0.0
    %1536 = vmatprep.subr.mxu0 0.0
    %1537 = vmatpush1.msra.mxu0 %v213
    %1538 = vmatprep.subr.mxu0 0.0
    %1539 = vmatpush1.msra.mxu0 %v212
    %1540 = vmatprep.subr.mxu0 0.0
    %1541 = vmatpush1.msra.mxu0 %v211
    %1542 = vmatprep.subr.mxu0 0.0
    %1543 = vmatpush1.msra.mxu0 %v210
    %1544 = vmatprep.subr.mxu0 0.0
    %1545 = vmatpush1.msra.mxu0 %v209
    %1546 = vmatprep.subr.mxu0 0.0
    %1547 = vmatpush1.msra.mxu0 %v208
    %1548 = vmatprep.subr.mxu0 0.0
    %1549 = vmatpush1.msra.mxu0 %v207
    %1550 = vmatprep.subr.mxu0 0.0
    %1551 = vmatpush1.msra.mxu0 %v206
    %1552 = vmatprep.subr.mxu0 0.0
    %1553 = vmatpush2.msra.mxu0 0.0
    %1554 = vmatprep.subr.mxu0 0.0
    %1555 = vmatpush2.msra.mxu0 0.0
    %1556 = vmatprep.subr.mxu0 0.0
    %1557 = vmatpush2.msra.mxu0 0.0
    %1558 = vmatprep.subr.mxu0 0.0
    %1559 = vmatpush2.msra.mxu0 0.0
    %1560 = vmatprep.subr.mxu0 0.0
    %1561 = vmatpush2.msra.mxu0 0.0
    %1562 = vmatprep.subr.mxu0 0.0
    %1563 = vmatpush2.msra.mxu0 0.0
    %1564 = vmatprep.subr.mxu0 0.0
    %1565 = vmatpush2.msra.mxu0 0.0
    %1566 = vmatprep.subr.mxu0 0.0
    %1567 = vmatpush2.msra.mxu0 0.0
    %1568 = vmatprep.subr.mxu0 0.0
    %1569 = vmatpush2.msra.mxu0 0.0
    %1570 = vmatprep.subr.mxu0 0.0
    %1571 = vmatpush2.msra.mxu0 0.0
    %1572 = vmatprep.subr.mxu0 0.0
    %1573 = vmatpush2.msra.mxu0 0.0
    %1574 = vmatprep.subr.mxu0 0.0
    %1575 = vmatpush2.msra.mxu0 0.0
    %1576 = vmatprep.subr.mxu0 0.0
    %1577 = vmatpush2.msra.mxu0 0.0
    %1578 = vmatprep.subr.mxu0 0.0
    %1579 = vmatpush2.msra.mxu0 0.0
    %1580 = vmatprep.subr.mxu0 0.0
    %1581 = vmatpush2.msra.mxu0 0.0
    %1582 = vmatprep.subr.mxu0 0.0
    %1583 = vmatpush2.msra.mxu0 0.0
    %1584 = vmatprep.mubr.f32.mxu0 0.0
    %1585 = vmatmul.mubr.f32.gmra.mxu0 %v1509
    %v1586 = vpop.f32.mrf.mxu0
    %v1587 = vadd.f32 0.0, %v1586
    %v1588 = vpop.f32.mrf.mxu0
    %1589 = vmatprep.mubr.f32.mxu0 0.0
    %1590 = vmatmul.mubr.f32.gmra.mxu0 %v1512
    %v1591 = vpop.f32.mrf.mxu0
    %v1592 = vadd.f32 0.0, %v1591
    %v1593 = vpop.f32.mrf.mxu0
    %1594 = vmatprep.mubr.f32.mxu0 0.0
    %1595 = vmatmul.mubr.f32.gmra.mxu0 %v1515
    %v1596 = vpop.f32.mrf.mxu0
    %v1597 = vadd.f32 0.0, %v1596
    %v1598 = vpop.f32.mrf.mxu0
    %1599 = vmatprep.mubr.f32.mxu0 0.0
    %1600 = vmatmul.mubr.f32.gmra.mxu0 %v1518
    %v1601 = vpop.f32.mrf.mxu0
    %v1602 = vadd.f32 0.0, %v1601
    %v1603 = vpop.f32.mrf.mxu0
    %1604 = vdwg.mxu0
    %v1605 = vadd.f32 %v1389, %v1587
    %v1606 = vadd.f32 %v1394, %v1592
    %v1607 = vadd.f32 %v1399, %v1597
    %v1608 = vadd.f32 %v1404, %v1602
    %v1609 = vadd.f32 %v1605, %v828
    %v1610 = vadd.f32 %v1606, %v833
    %v1611 = vadd.f32 %v1607, %v838
    %v1612 = vadd.f32 %v1608, %v843
    %1613 = vadd.xlane.f32.xlu0 %v1609
    %v1614 = vpop.xlane.xlu0 %1613
    %1615 = vadd.xlane.f32.xlu0 %v1610
    %v1616 = vpop.xlane.xlu0 %1615
    %1617 = vadd.xlane.f32.xlu0 %v1611
    %v1618 = vpop.xlane.xlu0 %1617
    %1619 = vadd.xlane.f32.xlu0 %v1612
    %v1620 = vpop.xlane.xlu0 %1619
    %v1621 = vmul.f32 %v1614, %v857
    %v1622 = vmul.f32 %v1616, %v857
    %v1623 = vmul.f32 %v1618, %v857
    %v1624 = vmul.f32 %v1620, %v857
    %v1625 = vsub.f32 %v1609, %v1621
    %v1626 = vsub.f32 %v1610, %v1622
    %v1627 = vsub.f32 %v1611, %v1623
    %v1628 = vsub.f32 %v1612, %v1624
    %v1629 = vmul.f32 %v1625, %v1625
    %v1630 = vmul.f32 %v1626, %v1626
    %v1631 = vmul.f32 %v1627, %v1627
    %v1632 = vmul.f32 %v1628, %v1628
    %1633 = vadd.xlane.f32.xlu0 %v1629
    %v1634 = vpop.xlane.xlu0 %1633
    %1635 = vadd.xlane.f32.xlu0 %v1630
    %v1636 = vpop.xlane.xlu0 %1635
    %1637 = vadd.xlane.f32.xlu0 %v1631
    %v1638 = vpop.xlane.xlu0 %1637
    %1639 = vadd.xlane.f32.xlu0 %v1632
    %v1640 = vpop.xlane.xlu0 %1639
    %v1641 = vmul.f32 %v1634, %v857
    %v1642 = vmul.f32 %v1636, %v857
    %v1643 = vmul.f32 %v1638, %v857
    %v1644 = vmul.f32 %v1640, %v857
    %v1645 = vadd.f32 %v1641, 1e-05
    %v1646 = vadd.f32 %v1642, 1e-05
    %v1647 = vadd.f32 %v1643, 1e-05
    %v1648 = vadd.f32 %v1644, 1e-05
    %v1649 = vrsqrt.pop %v1645
    %v1650 = vrsqrt.pop %v1646
    %v1651 = vrsqrt.pop %v1647
    %v1652 = vrsqrt.pop %v1648
    %v1653 = vmul.f32 %v1625, %v1649
    %v1654 = vmul.f32 %v1626, %v1650
    %v1655 = vmul.f32 %v1627, %v1651
    %v1656 = vmul.f32 %v1628, %v1652
    %v1657 = vmul.f32 %v1653, 0.5
    %v1658 = vmul.f32 %v1654, 0.5
    %v1659 = vmul.f32 %v1655, 0.5
    %v1660 = vmul.f32 %v1656, 0.5
    %v1661 = vmul.f32 %v1653, 0.70710677
    %v1662 = vmul.f32 %v1654, 0.70710677
    %v1663 = vmul.f32 %v1655, 0.70710677
    %v1664 = vmul.f32 %v1656, 0.70710677
    %v1665 = vand.u32 2147483647, %v1661
    %v1666 = vand.u32 2147483647, %v1662
    %v1667 = vand.u32 2147483647, %v1663
    %v1668 = vand.u32 2147483647, %v1664
    %v1669 = vmul.f32 %v1665, 0.3275911
    %v1670 = vmul.f32 %v1666, 0.3275911
    %v1671 = vmul.f32 %v1667, 0.3275911
    %v1672 = vmul.f32 %v1668, 0.3275911
    %v1673 = vadd.f32 %v1669, 1.0
    %v1674 = vadd.f32 %v1670, 1.0
    %v1675 = vadd.f32 %v1671, 1.0
    %v1676 = vadd.f32 %v1672, 1.0
    %v1677 = vrcp.pop %v1673
    %v1678 = vmul.f32 1.0, %v1677
    %v1679 = vrcp.pop %v1674
    %v1680 = vmul.f32 1.0, %v1679
    %v1681 = vrcp.pop %v1675
    %v1682 = vmul.f32 1.0, %v1681
    %v1683 = vrcp.pop %v1676
    %v1684 = vmul.f32 1.0, %v1683
    %v1685 = vmul.f32 %v1678, 1.0614054
    %v1686 = vmul.f32 %v1680, 1.0614054
    %v1687 = vmul.f32 %v1682, 1.0614054
    %v1688 = vmul.f32 %v1684, 1.0614054
    %v1689 = vadd.f32 %v1685, -1.4531521
    %v1690 = vadd.f32 %v1686, -1.4531521
    %v1691 = vadd.f32 %v1687, -1.4531521
    %v1692 = vadd.f32 %v1688, -1.4531521
    %v1693 = vmul.f32 %v1689, %v1678
    %v1694 = vmul.f32 %v1690, %v1680
    %v1695 = vmul.f32 %v1691, %v1682
    %v1696 = vmul.f32 %v1692, %v1684
    %v1697 = vadd.f32 %v1693, 1.4214138
    %v1698 = vadd.f32 %v1694, 1.4214138
    %v1699 = vadd.f32 %v1695, 1.4214138
    %v1700 = vadd.f32 %v1696, 1.4214138
    %v1701 = vmul.f32 %v1697, %v1678
    %v1702 = vmul.f32 %v1698, %v1680
    %v1703 = vmul.f32 %v1699, %v1682
    %v1704 = vmul.f32 %v1700, %v1684
    %v1705 = vadd.f32 %v1701, -0.28449672
    %v1706 = vadd.f32 %v1702, -0.28449672
    %v1707 = vadd.f32 %v1703, -0.28449672
    %v1708 = vadd.f32 %v1704, -0.28449672
    %v1709 = vmul.f32 %v1705, %v1678
    %v1710 = vmul.f32 %v1706, %v1680
    %v1711 = vmul.f32 %v1707, %v1682
    %v1712 = vmul.f32 %v1708, %v1684
    %v1713 = vadd.f32 %v1709, 0.2548296
    %v1714 = vadd.f32 %v1710, 0.2548296
    %v1715 = vadd.f32 %v1711, 0.2548296
    %v1716 = vadd.f32 %v1712, 0.2548296
    %v1717 = vmul.f32 %v1713, %v1678
    %v1718 = vmul.f32 %v1714, %v1680
    %v1719 = vmul.f32 %v1715, %v1682
    %v1720 = vmul.f32 %v1716, %v1684
    %v1721 = vsub.f32 0.0, %v1665
    %v1722 = vsub.f32 0.0, %v1666
    %v1723 = vsub.f32 0.0, %v1667
    %v1724 = vsub.f32 0.0, %v1668
    %v1725 = vmul.f32 %v1721, %v1665
    %v1726 = vmul.f32 %v1722, %v1666
    %v1727 = vmul.f32 %v1723, %v1667
    %v1728 = vmul.f32 %v1724, %v1668
    %v1729 = vmul.f32 %v1725, 1.442695
    %v1730 = vpow.pop %v1729
    %v1731 = vmul.f32 %v1726, 1.442695
    %v1732 = vpow.pop %v1731
    %v1733 = vmul.f32 %v1727, 1.442695
    %v1734 = vpow.pop %v1733
    %v1735 = vmul.f32 %v1728, 1.442695
    %v1736 = vpow.pop %v1735
    %v1737 = vmul.f32 %v1717, %v1730
    %v1738 = vmul.f32 %v1718, %v1732
    %v1739 = vmul.f32 %v1719, %v1734
    %v1740 = vmul.f32 %v1720, %v1736
    %v1741 = vsub.f32 1.0, %v1737
    %v1742 = vsub.f32 1.0, %v1738
    %v1743 = vsub.f32 1.0, %v1739
    %v1744 = vsub.f32 1.0, %v1740
    %vm1745 = vcmp.ge.f32.partialorder %v1661, 0.0
    %vm1746 = vcmp.ge.f32.partialorder %v1662, 0.0
    %vm1747 = vcmp.ge.f32.partialorder %v1663, 0.0
    %vm1748 = vcmp.ge.f32.partialorder %v1664, 0.0
    %v1749 = vsub.f32 0.0, %v1741
    %v1750 = vsub.f32 0.0, %v1742
    %v1751 = vsub.f32 0.0, %v1743
    %v1752 = vsub.f32 0.0, %v1744
    %v1753 = vsel %vm1745, %v1741, %v1749
    %v1754 = vsel %vm1746, %v1742, %v1750
    %v1755 = vsel %vm1747, %v1743, %v1751
    %v1756 = vsel %vm1748, %v1744, %v1752
    %v1757 = vadd.f32 %v1753, 1.0
    %v1758 = vadd.f32 %v1754, 1.0
    %v1759 = vadd.f32 %v1755, 1.0
    %v1760 = vadd.f32 %v1756, 1.0
    %v1761 = vmul.f32 %v1657, %v1757
    %v1762 = vmul.f32 %v1658, %v1758
    %v1763 = vmul.f32 %v1659, %v1759
    %v1764 = vmul.f32 %v1660, %v1760
    %s1765 = scalar_lea.vmem [#allocation2], 32
    %1766 = vst [vmem:[%s1765] sm:$0xff] %v1761
    %1767 = vst [vmem:[%s1765 + $0x8] sm:$0xff] %v1762
    %1768 = vst [vmem:[%s1765 + $0x10] sm:$0xff] %v1763
    %1769 = vst [vmem:[%s1765 + $0x18] sm:$0xff] %v1764
    // Predicated region
    $region14: #{upscaler_forward.1} parent=1 // pred_check
      _
    $region15: #{upscaler_forward.1} parent=1 // pred_check_branch
      %1771 = sbr.rel (0) target = $region17
    $region16: #{upscaler_forward.1} parent=1 // pred_region
      %s1773 = ssub.s32 1024, 1024
      %1774 = vsyncadd [#allocation3], %s1773
      %s1775 = sshll.u32 [#allocation2], 4
      %s1776 = int_to_ptr.vmem [resolvable:$true] %s1775
      %1781 = dma.vmem_to_hbm [thread:$0]  %s1776, 1024, %s3, [#allocation3], 128, 128, 8
    $region17: #{upscaler_forward.1} parent=1 // pred_fallthru
      _
    // Predicated region
    $region18: #{upscaler_forward.1} parent=1 // pred_check
      _
    $region19: #{upscaler_forward.1} parent=1 // pred_check_branch
      %1783 = sbr.rel (0) target = $region21
    $region20: #{upscaler_forward.1} parent=1 // pred_region
      %1784 = dma.done [#allocation3], 1024
    $region21: #{upscaler_forward.1} parent=1 // pred_fallthru
      _
    %1785 = vsyncpa [#allocation3], 1

</llo_original>
